<compile_context>
chip_gen: v7x
topology: tpu7x:2x2x1
jax: 0.10.0
libtpu: 0.0.40
codegen_flags: <defaults>
</compile_context>

<pallas_src>
import math
import functools

import jax
import jax.numpy as jnp
from jax import lax
from jax.experimental import pallas as pl
from jax.experimental.pallas import tpu as pltpu


def _round_up(v, m):
    return ((v + m - 1) // m) * m


def _largest_divisor_leq(n, cap):
    d = max(1, min(n, cap))
    while n % d:
        d -= 1
    return d


def _const_spec(shape):
    """BlockSpec for an input whose block never changes (weights / bias)."""
    zeros = (0,) * len(shape)
    idx = lambda b, qt: zeros
    if hasattr(pl, "Buffered"):
        try:
            # Constant index map -> the block is fetched once; one buffer is enough.
            return pl.BlockSpec(shape, idx, pipeline_mode=pl.Buffered(1))
        except TypeError:
            pass
    return pl.BlockSpec(shape, idx)


def cross_attention_kernel(tok_ref, wq_ref, wkv_ref, wo_ref, bo_ref, out_ref, kv_scr,
                           *, num_heads: int, head_dim: int, q_tile: int,
                           head_chunk: int, kv_t_chunk: int):
    # tok_ref : (1, T, hidden)        bf16   full sequence for this batch row
    # wq_ref  : (H, hidden, D)        bf16   head-blocked, 1/sqrt(D) folded in
    # wkv_ref : (2H, hidden, D)       bf16   K heads then V heads
    # wo_ref  : (H, D, hidden)        bf16   head-blocked output projection
    # bo_ref  : (1, hidden)           f32
    # out_ref : (1, TQ, hidden)       tokens dtype
    # kv_scr  : (2H, T, D)            bf16   VMEM scratch, persists across qt
    H, D, TQ, Hc = num_heads, head_dim, q_tile, head_chunk
    T = tok_ref.shape[1]
    hidden = tok_ref.shape[2]
    n_head_chunks = H // Hc
    n_kv_h = (2 * H) // Hc
    n_kv_t = T // kv_t_chunk
    qt = pl.program_id(1)

    # ---- K/V projection: once per batch row (qt == 0), cached head-major.
    #      Chunked over T and head groups to bound the f32 temp / broadcast. ----
    @pl.when(qt == 0)
    def _project_kv():
        def t_body(ci, carry):
            t0 = pl.multiple_of(ci * kv_t_chunk, kv_t_chunk)
            xc = tok_ref[0, pl.ds(t0, kv_t_chunk), :]            # (Tc, hidden) bf16

            def h_body(gi, carry_h):
                h0 = pl.multiple_of(gi * Hc, Hc)
                w_c = wkv_ref[pl.ds(h0, Hc), :, :]               # (Hc, hidden, D)
                # Leading-axis broadcast (cheap, unmasked) -> batched MXU einsum.
                xb = jnp.broadcast_to(xc[None], (Hc, kv_t_chunk, hidden))
                kv = jnp.einsum('htc,hcd->htd', xb, w_c,
                                preferred_element_type=jnp.float32)
                kv_scr[pl.ds(h0, Hc), pl.ds(t0, kv_t_chunk), :] = kv.astype(kv_scr.dtype)
                return carry_h

            return lax.fori_loop(0, n_kv_h, h_body, carry)

        lax.fori_loop(0, n_kv_t, t_body, 0)

    # ---- Query tile for this grid step. ----
    i0 = pl.multiple_of(qt * TQ, TQ)
    xq = tok_ref[0, pl.ds(i0, TQ), :]                            # (TQ, hidden) bf16

    # ---- Attention + output projection, chunked over head groups.  The per-chunk
    #      broadcast is deliberate: it bounds live temps to O(Hc). ----
    def head_body(g, acc):
        h0 = pl.multiple_of(g * Hc, Hc)
        xb = jnp.broadcast_to(xq[None], (Hc, TQ, hidden))
        q = jnp.einsum('htc,hcd->htd', xb, wq_ref[pl.ds(h0, Hc), :, :],
                       preferred_element_type=jnp.float32).astype(jnp.bfloat16)
        k = kv_scr[pl.ds(h0, Hc), :, :]                          # (Hc, T, D) bf16
        v = kv_scr[pl.ds(H + h0, Hc), :, :]

        s = jnp.einsum('htd,hsd->hts', q, k,
                       preferred_element_type=jnp.float32)        # (Hc, TQ, T) f32
        s = s - jnp.max(s, axis=-1, keepdims=True)
        p = jnp.exp(s)
        # Exact reciprocal on the tiny (Hc, TQ, 1) denominator (accuracy > approx win).
        p = (p * (1.0 / jnp.sum(p, axis=-1, keepdims=True))).astype(jnp.bfloat16)

        ctx = jnp.einsum('hts,hsd->htd', p, v,
                         preferred_element_type=jnp.float32).astype(jnp.bfloat16)
        o = jnp.einsum('htd,hdc->htc', ctx, wo_ref[pl.ds(h0, Hc), :, :],
                       preferred_element_type=jnp.float32)        # (Hc, TQ, hidden)
        return acc + jnp.sum(o, axis=0)

    acc = lax.fori_loop(0, n_head_chunks, head_body,
                        jnp.zeros((TQ, hidden), jnp.float32))
    out_ref[0] = (acc + bo_ref[...]).astype(out_ref.dtype)


def cross_attention(tokens, wq, wk, wv, wo, bo, *, num_heads: int,
                    q_tile=None, head_chunk=None):
    """tokens: (B, T, hidden). wq/wk/wv: (hidden, embed). wo: (embed, hidden).
    bo: (hidden,). Returns (B, T, hidden) in tokens.dtype."""
    B, T, hidden = tokens.shape
    embed = wq.shape[1]
    assert embed % num_heads == 0, "embed_dim must be divisible by num_heads"
    H = num_heads
    D = embed // num_heads

    TQ = q_tile if q_tile is not None else (T if T <= 128 else 128)
    assert T % TQ == 0, "sequence length must be a multiple of the query tile"
    NQ = T // TQ

    # K/V-projection T chunk.
    if T <= 256:
        kv_t = T
    elif T % 256 == 0:
        kv_t = 256
    else:
        kv_t = TQ

    # Head-group size: largest divisor of H that keeps per-chunk score temps
    # (3*Hc*TQ*T*4B) and the per-chunk LHS broadcast bounded (v7x 64 MiB safe).
    if head_chunk is not None:
        assert H % head_chunk == 0, "head_chunk must divide num_heads"
        Hc = head_chunk
    else:
        t_pad = max(_round_up(T, 128), 128)
        cap_scores = max(1, (8 << 20) // (3 * TQ * t_pad * 4))
        cap_bcast = max(1, (4 << 20) // (max(TQ, kv_t) * max(hidden, 128) * 2))
        Hc = _largest_divisor_leq(H, min(H, cap_scores, cap_bcast))

    mm = jnp.bfloat16
    scale = 1.0 / math.sqrt(D)
    tokens_mm = tokens.astype(mm)
    # Head-blocked weights; scale folded into Wq so the kernel has no q*scale pass.
    wq_h = (wq * scale).reshape(hidden, H, D).transpose(1, 0, 2).astype(mm)  # (H, hidden, D)
    wk_h = wk.reshape(hidden, H, D).transpose(1, 0, 2)
    wv_h = wv.reshape(hidden, H, D).transpose(1, 0, 2)
    wkv_h = jnp.concatenate([wk_h, wv_h], axis=0).astype(mm)                 # (2H, hidden, D)
    wo_h = wo.reshape(H, D, hidden).astype(mm)                               # (H, D, hidden)
    bo2 = bo.reshape(1, hidden).astype(jnp.float32)

    # ---- VMEM footprint estimate -> explicit vmem_limit_bytes. ----
    def tile_bytes(shape, itemsize):
        lead = 1
        for s in shape[:-2]:
            lead *= int(s)
        return lead * _round_up(int(shape[-2]), 8) * _round_up(int(shape[-1]), 128) * itemsize

    out_itemsize = tokens.dtype.itemsize
    est = 0
    est += 2 * tile_bytes((T, hidden), 2)                 # tokens block (double buffered)
    est += tile_bytes((H, hidden, D), 2)                  # Wq (single buffered)
    est += tile_bytes((2 * H, hidden, D), 2)              # Wk|Wv
    est += tile_bytes((H, D, hidden), 2)                  # Wo
    est += tile_bytes((1, hidden), 4)                     # bias
    est += 2 * tile_bytes((TQ, hidden), out_itemsize)     # output block (double buffered)
    est += tile_bytes((2 * H, T, D), 2)                   # K/V scratch
    est += tile_bytes((Hc, kv_t, hidden), 2) + tile_bytes((Hc, kv_t, D), 4)   # KV-proj temps
    est += tile_bytes((Hc, TQ, hidden), 2) + 2 * tile_bytes((Hc, TQ, D), 4)   # Q temps
    est += 3 * tile_bytes((Hc, TQ, T), 4)                 # scores / probs
    est += tile_bytes((Hc, TQ, hidden), 4) + tile_bytes((TQ, hidden), 4)      # out-proj + acc
    vmem_limit = int(min(max(est * 3 // 2, 32 << 20), 64 << 20))

    kernel = functools.partial(
        cross_attention_kernel,
        num_heads=H, head_dim=D, q_tile=TQ, head_chunk=Hc, kv_t_chunk=kv_t)

    return pl.pallas_call(
        kernel,
        out_shape=jax.ShapeDtypeStruct((B, T, hidden), tokens.dtype),
        grid_spec=pltpu.PrefetchScalarGridSpec(
            num_scalar_prefetch=0,
            grid=(B, NQ),
            in_specs=[
                # Full sequence for this batch row (constant over qt -> no re-DMA).
                pl.BlockSpec((1, T, hidden), lambda b, qt: (b, 0, 0)),
                _const_spec((H, hidden, D)),          # Wq   (head-blocked)
                _const_spec((2 * H, hidden, D)),      # Wk|Wv (head-blocked)
                _const_spec((H, D, hidden)),          # Wo   (head-blocked)
                _const_spec((1, hidden)),             # bias
            ],
            out_specs=pl.BlockSpec((1, TQ, hidden), lambda b, qt: (b, qt, 0)),
            scratch_shapes=[pltpu.VMEM((2 * H, T, D), mm)],   # K/V head-major cache
        ),
        # Batch axis parallel (megacore / 2-TC sharding); query-tile axis must be
        # "arbitrary" so the qt==0 K/V cache fill precedes later tiles on the same core.
        compiler_params=pltpu.CompilerParams(
            dimension_semantics=("parallel", "arbitrary"),
            vmem_limit_bytes=vmem_limit),
    )(tokens_mm, wq_h, wkv_h, wo_h, bo2)


def reference(tokens, wq, wk, wv, wo, bo, *, num_heads: int):
    """Pure-JAX f32 reference matching the PyTorch forward exactly."""
    B, T, hidden = tokens.shape
    embed = wq.shape[1]
    D = embed // num_heads
    Q = tokens @ wq
    K = tokens @ wk
    V = tokens @ wv

    def split(x):  # B T (H D) -> B H T D
        return x.reshape(B, T, num_heads, D).transpose(0, 2, 1, 3)

    Qh, Kh, Vh = split(Q), split(K), split(V)
    scores = jnp.einsum('bhtd,bhsd->bhts', Qh, Kh) / math.sqrt(D)
    attn = jax.nn.softmax(scores, axis=-1)
    ctx = jnp.einsum('bhts,bhsd->bhtd', attn, Vh)
    ctx = ctx.transpose(0, 2, 1, 3).reshape(B, T, embed)
    return ctx @ wo + bo


if __name__ == "__main__":
    def lin_init(k, fan_in, fan_out, dtype):
        bound = 1.0 / math.sqrt(fan_in)
        return jax.random.uniform(k, (fan_in, fan_out), dtype, -bound, bound)

    key = jax.random.PRNGKey(0)
    configs = [
        # Small module-consistent shapes.
        dict(B=2, T=8, hidden=32, embed=32, heads=8, head_chunk=None),
        # Still small, but exercises multi-query-tile, qt==0 scratch reuse, the
        # KV T-chunk loop and the head-chunk loop with dynamic ref slices.
        dict(B=2, T=512, hidden=64, embed=64, heads=4, head_chunk=2),
    ]
    for cfg in configs:
        key, k_tok, k_q, k_k, k_v, k_o, k_b = jax.random.split(key, 7)
        dtype = jnp.float32
        tokens = jax.random.normal(k_tok, (cfg["B"], cfg["T"], cfg["hidden"]), dtype)
        wq = lin_init(k_q, cfg["hidden"], cfg["embed"], dtype)
        wk = lin_init(k_k, cfg["hidden"], cfg["embed"], dtype)
        wv = lin_init(k_v, cfg["hidden"], cfg["embed"], dtype)
        wo = lin_init(k_o, cfg["embed"], cfg["hidden"], dtype)
        bound = 1.0 / math.sqrt(cfg["embed"])
        bo = jax.random.uniform(k_b, (cfg["hidden"],), dtype, -bound, bound)

        out = cross_attention(tokens, wq, wk, wv, wo, bo,
                              num_heads=cfg["heads"], head_chunk=cfg["head_chunk"])
        out = jax.block_until_ready(out)
        ref = reference(tokens, wq, wk, wv, wo, bo, num_heads=cfg["heads"])
        assert out.shape == ref.shape
        # bf16 MXU inputs with f32 accumulation + exact softmax reciprocal.
        assert jnp.allclose(out, ref, atol=5e-2, rtol=5e-2), (
            f"max abs err {jnp.max(jnp.abs(out - ref))} for {cfg}")

    print("KERNEL_OK")
</pallas_src>

<mosaic_0001>
module attributes {stable_mosaic.version = 11 : i64} {
  func.func @cross_attention_kernel(%arg0: i32, %arg1: i32, %arg2: memref<1x8x32xbf16, #tpu.memory_space<vmem>>, %arg3: memref<8x32x4xbf16, #tpu.memory_space<vmem>>, %arg4: memref<16x32x4xbf16, #tpu.memory_space<vmem>>, %arg5: memref<8x4x32xbf16, #tpu.memory_space<vmem>>, %arg6: memref<1x32xf32, #tpu.memory_space<vmem>>, %arg7: memref<1x8x32xf32, #tpu.memory_space<vmem>>, %arg8: memref<16x8x4xbf16, #tpu.memory_space<vmem>>) attributes {dimension_semantics = [#tpu.dimension_semantics<parallel>, #tpu.dimension_semantics<arbitrary>], iteration_bounds = array<i64: 2, 1>, scalar_prefetch = 0 : i64, scratch_operands = 1 : i64, tpu.core_type = #tpu.core_type<tc>, window_params = [{transform_indices = @transform_0, window_bounds = array<i64: 1, 8, 32>}, {pipeline_mode = #tpu.pipeline_mode<synchronous>, transform_indices = @transform_1, window_bounds = array<i64: 8, 32, 4>}, {pipeline_mode = #tpu.pipeline_mode<synchronous>, transform_indices = @transform_2, window_bounds = array<i64: 16, 32, 4>}, {pipeline_mode = #tpu.pipeline_mode<synchronous>, transform_indices = @transform_3, window_bounds = array<i64: 8, 4, 32>}, {pipeline_mode = #tpu.pipeline_mode<synchronous>, transform_indices = @transform_4, window_bounds = array<i64: 1, 32>}, {transform_indices = @transform_5, window_bounds = array<i64: 1, 8, 32>}]} {
    %c0_i32 = arith.constant 0 : i32
    %0 = arith.cmpi eq, %arg1, %c0_i32 : i32
    %1 = arith.extui %0 : i1 to i32
    %c0_i32_0 = arith.constant 0 : i32
    %2 = arith.cmpi ne, %1, %c0_i32_0 : i32
    scf.if %2 {
      %c0_i32_26 = arith.constant 0 : i32
      %c8_i32_27 = arith.constant 8 : i32
      %49 = arith.muli %c0_i32_26, %c8_i32_27 : i32
      %50 = tpu.assume_multiple %49, 8 : i32
      %c0_28 = arith.constant 0 : index
      %51 = arith.index_cast %50 : i32 to index
      %c0_29 = arith.constant 0 : index
      %52 = vector.load %arg2[%c0_28, %51, %c0_29] : memref<1x8x32xbf16, #tpu.memory_space<vmem>>, vector<1x8x32xbf16>
      %53 = vector.shape_cast %52 : vector<1x8x32xbf16> to vector<8x32xbf16>
      %c0_i32_30 = arith.constant 0 : i32
      %c2_i32 = arith.constant 2 : i32
      %54 = arith.addi %c0_i32_30, %c2_i32 : i32
      %c1_i32_31 = arith.constant 1 : i32
      scf.for %arg9 = %c0_i32_30 to %54 step %c1_i32_31  : i32 {
        %c8_i32_34 = arith.constant 8 : i32
        %55 = arith.muli %arg9, %c8_i32_34 : i32
        %56 = tpu.assume_multiple %55, 8 : i32
        %57 = arith.index_cast %56 : i32 to index
        %c0_35 = arith.constant 0 : index
        %c0_36 = arith.constant 0 : index
        %58 = vector.load %arg4[%57, %c0_35, %c0_36] : memref<16x32x4xbf16, #tpu.memory_space<vmem>>, vector<8x32x4xbf16>
        %59 = vector.shape_cast %53 : vector<8x32xbf16> to vector<1x8x32xbf16>
        %60 = vector.shape_cast %59 : vector<1x8x32xbf16> to vector<1x8x32xbf16>
        %61 = vector.broadcast %60 : vector<1x8x32xbf16> to vector<8x8x32xbf16>
        "tpu.trace_start"() <{level = 10 : i32, message = "htc,hcd->htd"}> : () -> ()
        %cst_37 = arith.constant dense<0.000000e+00> : vector<8x8x4xf32>
        %62 = tpu.matmul %61, %58, %cst_37 {dimension_numbers = #tpu.dot_dimension_numbers<[2], [1], [1], [2], [0, 0, 0, 1, 1, 2], [0], [0]>} : vector<8x8x32xbf16>, vector<8x32x4xbf16>, vector<8x8x4xf32> -> vector<8x8x4xf32>
        "tpu.trace_stop"() : () -> ()
        %63 = arith.truncf %62 : vector<8x8x4xf32> to vector<8x8x4xbf16>
        %64 = arith.index_cast %56 : i32 to index
        %65 = arith.index_cast %50 : i32 to index
        %c0_38 = arith.constant 0 : index
        %66 = vector.load %arg8[%64, %65, %c0_38] : memref<16x8x4xbf16, #tpu.memory_space<vmem>>, vector<8x8x4xbf16>
        tpu.vector_store %arg8[%64, %65, %c0_38], %63 {strides = array<i32>} : memref<16x8x4xbf16, #tpu.memory_space<vmem>>, vector<8x8x4xbf16>,
      }
      %c2_i32_32 = arith.constant 2 : i32
      %c1_i32_33 = arith.constant 1 : i32
    } else {
    }
    %c8_i32 = arith.constant 8 : i32
    %3 = arith.muli %arg1, %c8_i32 : i32
    %4 = tpu.assume_multiple %3, 8 : i32
    %c0 = arith.constant 0 : index
    %5 = arith.index_cast %4 : i32 to index
    %c0_1 = arith.constant 0 : index
    %6 = vector.load %arg2[%c0, %5, %c0_1] : memref<1x8x32xbf16, #tpu.memory_space<vmem>>, vector<1x8x32xbf16>
    %7 = vector.shape_cast %6 : vector<1x8x32xbf16> to vector<8x32xbf16>
    %cst = arith.constant 0.000000e+00 : f32
    %8 = vector.broadcast %cst : f32 to vector<8x32xf32>
    %c0_i32_2 = arith.constant 0 : i32
    %c8_i32_3 = arith.constant 8 : i32
    %9 = arith.muli %c0_i32_2, %c8_i32_3 : i32
    %10 = tpu.assume_multiple %9, 8 : i32
    %11 = vector.shape_cast %7 : vector<8x32xbf16> to vector<1x8x32xbf16>
    %12 = vector.shape_cast %11 : vector<1x8x32xbf16> to vector<1x8x32xbf16>
    %13 = vector.broadcast %12 : vector<1x8x32xbf16> to vector<8x8x32xbf16>
    %14 = arith.index_cast %10 : i32 to index
    %c0_4 = arith.constant 0 : index
    %c0_5 = arith.constant 0 : index
    %15 = vector.load %arg3[%14, %c0_4, %c0_5] : memref<8x32x4xbf16, #tpu.memory_space<vmem>>, vector<8x32x4xbf16>
    "tpu.trace_start"() <{level = 10 : i32, message = "htc,hcd->htd"}> : () -> ()
    %cst_6 = arith.constant dense<0.000000e+00> : vector<8x8x4xf32>
    %16 = tpu.matmul %13, %15, %cst_6 {dimension_numbers = #tpu.dot_dimension_numbers<[2], [1], [1], [2], [0, 0, 0, 1, 1, 2], [0], [0]>} : vector<8x8x32xbf16>, vector<8x32x4xbf16>, vector<8x8x4xf32> -> vector<8x8x4xf32>
    "tpu.trace_stop"() : () -> ()
    %17 = arith.truncf %16 : vector<8x8x4xf32> to vector<8x8x4xbf16>
    %18 = arith.index_cast %10 : i32 to index
    %c0_7 = arith.constant 0 : index
    %c0_8 = arith.constant 0 : index
    %19 = vector.load %arg8[%18, %c0_7, %c0_8] : memref<16x8x4xbf16, #tpu.memory_space<vmem>>, vector<8x8x4xbf16>
    %c8_i32_9 = arith.constant 8 : i32
    %20 = arith.addi %c8_i32_9, %10 : i32
    %21 = arith.index_cast %20 : i32 to index
    %c0_10 = arith.constant 0 : index
    %c0_11 = arith.constant 0 : index
    %22 = vector.load %arg8[%21, %c0_10, %c0_11] : memref<16x8x4xbf16, #tpu.memory_space<vmem>>, vector<8x8x4xbf16>
    "tpu.trace_start"() <{level = 10 : i32, message = "htd,hsd->hts"}> : () -> ()
    %cst_12 = arith.constant dense<0.000000e+00> : vector<8x8x8xf32>
    %23 = tpu.matmul %17, %19, %cst_12 {dimension_numbers = #tpu.dot_dimension_numbers<[2], [2], [1], [1], [0, 0, 0, 1, 1, 1], [0], [0]>} : vector<8x8x4xbf16>, vector<8x8x4xbf16>, vector<8x8x8xf32> -> vector<8x8x8xf32>
    "tpu.trace_stop"() : () -> ()
    %cst_13 = arith.constant dense<0xFF800000> : vector<8x8xf32>
    %24 = vector.multi_reduction <maximumf>, %23, %cst_13 [2] : vector<8x8x8xf32> to vector<8x8xf32>
    %25 = vector.shape_cast %24 : vector<8x8xf32> to vector<8x8x1xf32>
    %26 = vector.broadcast %25 : vector<8x8x1xf32> to vector<8x8x8xf32>
    %27 = arith.subf %23, %26 : vector<8x8x8xf32>
    %28 = math.exp %27 : vector<8x8x8xf32>
    %cst_14 = arith.constant dense<0.000000e+00> : vector<8x8xf32>
    %29 = vector.multi_reduction <add>, %28, %cst_14 [2] : vector<8x8x8xf32> to vector<8x8xf32>
    %30 = vector.shape_cast %29 : vector<8x8xf32> to vector<8x8x1xf32>
    %cst_15 = arith.constant 1.000000e+00 : f32
    %31 = vector.broadcast %cst_15 : f32 to vector<8x8x1xf32>
    %32 = arith.divf %31, %30 : vector<8x8x1xf32>
    %33 = vector.broadcast %32 : vector<8x8x1xf32> to vector<8x8x8xf32>
    %34 = arith.mulf %28, %33 : vector<8x8x8xf32>
    %35 = arith.truncf %34 : vector<8x8x8xf32> to vector<8x8x8xbf16>
    "tpu.trace_start"() <{level = 10 : i32, message = "hts,hsd->htd"}> : () -> ()
    %cst_16 = arith.constant dense<0.000000e+00> : vector<8x8x4xf32>
    %36 = tpu.matmul %35, %22, %cst_16 {dimension_numbers = #tpu.dot_dimension_numbers<[2], [1], [1], [2], [0, 0, 0, 1, 1, 2], [0], [0]>} : vector<8x8x8xbf16>, vector<8x8x4xbf16>, vector<8x8x4xf32> -> vector<8x8x4xf32>
    "tpu.trace_stop"() : () -> ()
    %37 = arith.truncf %36 : vector<8x8x4xf32> to vector<8x8x4xbf16>
    %38 = arith.index_cast %10 : i32 to index
    %c0_17 = arith.constant 0 : index
    %c0_18 = arith.constant 0 : index
    %39 = vector.load %arg5[%38, %c0_17, %c0_18] : memref<8x4x32xbf16, #tpu.memory_space<vmem>>, vector<8x4x32xbf16>
    "tpu.trace_start"() <{level = 10 : i32, message = "htd,hdc->htc"}> : () -> ()
    %cst_19 = arith.constant dense<0.000000e+00> : vector<8x8x32xf32>
    %40 = tpu.matmul %37, %39, %cst_19 {dimension_numbers = #tpu.dot_dimension_numbers<[2], [1], [1], [2], [0, 0, 0, 1, 1, 2], [0], [0]>} : vector<8x8x4xbf16>, vector<8x4x32xbf16>, vector<8x8x32xf32> -> vector<8x8x32xf32>
    "tpu.trace_stop"() : () -> ()
    %cst_20 = arith.constant dense<0.000000e+00> : vector<8x32xf32>
    %41 = vector.multi_reduction <add>, %40, %cst_20 [0] : vector<8x8x32xf32> to vector<8x32xf32>
    %42 = arith.addf %8, %41 : vector<8x32xf32>
    %c1_i32 = arith.constant 1 : i32
    %c0_21 = arith.constant 0 : index
    %c0_22 = arith.constant 0 : index
    %43 = vector.load %arg6[%c0_21, %c0_22] : memref<1x32xf32, #tpu.memory_space<vmem>>, vector<1x32xf32>
    %44 = vector.broadcast %43 : vector<1x32xf32> to vector<8x32xf32>
    %45 = arith.addf %42, %44 : vector<8x32xf32>
    %c0_23 = arith.constant 0 : index
    %c0_24 = arith.constant 0 : index
    %c0_25 = arith.constant 0 : index
    %46 = vector.load %arg7[%c0_23, %c0_24, %c0_25] : memref<1x8x32xf32, #tpu.memory_space<vmem>>, vector<1x8x32xf32>
    %47 = vector.shape_cast %46 : vector<1x8x32xf32> to vector<8x32xf32>
    %48 = vector.shape_cast %45 : vector<8x32xf32> to vector<1x8x32xf32>
    tpu.vector_store %arg7[%c0_23, %c0_24, %c0_25], %48 {strides = array<i32>} : memref<1x8x32xf32, #tpu.memory_space<vmem>>, vector<1x8x32xf32>,
    return
  }
  func.func @transform_0(%arg0: i32, %arg1: i32) -> (i32, i32, i32) {
    %c0_i32 = arith.constant 0 : i32
    %c0_i32_0 = arith.constant 0 : i32
    %c0_i32_1 = arith.constant 0 : i32
    return %arg0, %c0_i32, %c0_i32_0 : i32, i32, i32
  }
  func.func @transform_1(%arg0: i32, %arg1: i32) -> (i32, i32, i32) {
    %c0_i32 = arith.constant 0 : i32
    %c0_i32_0 = arith.constant 0 : i32
    %c0_i32_1 = arith.constant 0 : i32
    %c0_i32_2 = arith.constant 0 : i32
    return %c0_i32, %c0_i32_0, %c0_i32_1 : i32, i32, i32
  }
  func.func @transform_2(%arg0: i32, %arg1: i32) -> (i32, i32, i32) {
    %c0_i32 = arith.constant 0 : i32
    %c0_i32_0 = arith.constant 0 : i32
    %c0_i32_1 = arith.constant 0 : i32
    %c0_i32_2 = arith.constant 0 : i32
    return %c0_i32, %c0_i32_0, %c0_i32_1 : i32, i32, i32
  }
  func.func @transform_3(%arg0: i32, %arg1: i32) -> (i32, i32, i32) {
    %c0_i32 = arith.constant 0 : i32
    %c0_i32_0 = arith.constant 0 : i32
    %c0_i32_1 = arith.constant 0 : i32
    %c0_i32_2 = arith.constant 0 : i32
    return %c0_i32, %c0_i32_0, %c0_i32_1 : i32, i32, i32
  }
  func.func @transform_4(%arg0: i32, %arg1: i32) -> (i32, i32) {
    %c0_i32 = arith.constant 0 : i32
    %c0_i32_0 = arith.constant 0 : i32
    %c0_i32_1 = arith.constant 0 : i32
    return %c0_i32, %c0_i32_0 : i32, i32
  }
  func.func @transform_5(%arg0: i32, %arg1: i32) -> (i32, i32, i32) {
    %c0_i32 = arith.constant 0 : i32
    %c0_i32_0 = arith.constant 0 : i32
    return %arg0, %arg1, %c0_i32 : i32, i32, i32
  }
}

</mosaic_0001>

<llo_original>
// kernel: tpu_custom_call.1
$region0: #{tpu_custom_call.1}
  #allocation0 [shape = 'u32[]', space=smem, size = 0x4, offset = 0x4, fixed_abs, tag = 'smem constant byte address 0x4 - core index']
  #allocation1 [shape = 'u32[144,128]{1,0:T(1,128)}', space=vmem, size = 0x12000, scoped, tag = 'internal scratch']
  #allocation2 [shape = 'bf16[16,8,4]{2,1,0:T(8,128)(2,1)}', space=vmem, size = 0x8000, scoped, tag = 'scratch operand']
  %s0 = inlined_call_operand.vmem [shape: bf16[2,8,32], index: 0, kind: input, shape index: {}]
  %s1 = inlined_call_operand.vmem [shape: bf16[8,32,4], index: 1, kind: input, shape index: {}]
  %s2 = inlined_call_operand.vmem [shape: bf16[16,32,4], index: 2, kind: input, shape index: {}]
  %s3 = inlined_call_operand.vmem [shape: bf16[8,4,32], index: 3, kind: input, shape index: {}]
  %s4 = inlined_call_operand.vmem [shape: f32[1,32], index: 4, kind: input, shape index: {}]
  %s5 = inlined_call_operand.hbm [shape: f32[2,8,32], index: 5, kind: output, shape index: {}]
  %s6 = sld [smem:[#allocation0]]
  $region64: #{tpu_custom_call.1} parent=0
    _
  %s8 = ssub.s32 1, %s6
  %s9 = scalar_select 0, %s8, %s6
  $region1: #{tpu_custom_call.1} parent=0
    #allocation3 [shape = 'u8[8192]{0}', space=vmem, size = 0x2000, scoped, tag = 'output window, operand 0']
    #allocation4 [shape = 's32[2]{0}', space=sflag, size = 0x8, scoped, tag = 'scoped memory for tpu_custom_call.1']
    %10 = vsyncpa [#allocation4], 0
    %s11 = scalar_lea.sflag [#allocation4], 1
    %12 = vsyncpa %s11, 0
    loop: start=0, step=1, limit=4
    $region2: #{tpu_custom_call.1} parent=1 // loop_pre_header
      _
    $region3: #{tpu_custom_call.1} parent=1 // loop_header
      %s14 = sphi 0, %s18
      %p15 = scmp.ge.s32.totalorder %s14, 4
      %s21 = sphi 0, %s33
      %s22 = sphi 0, %s29
      %s23 = sphi 0, %s21
      %s24 = sphi 0, %s22
      %s25 = sphi 0, %s23
      %s26 = sphi 0, %s24
      %s36 = sphi 0, %s38
      %s39 = sphi 0, %s36
      %s40 = sphi 0, %s39
      %s56 = sphi 0, %s40
      %s60 = sphi 0, %s60
      %s62 = sphi 0, %s60
      %s63 = sphi 0, %s62
      %s77 = sphi 0, %s63
      %s81 = sphi 0, %s81
      %s83 = sphi 0, %s81
      %s84 = sphi 0, %s83
      %s98 = sphi 0, %s84
      %s102 = sphi 0, %s102
      %s104 = sphi 0, %s102
      %s105 = sphi 0, %s104
      %s119 = sphi 0, %s105
      %s123 = sphi 0, %s123
      %s125 = sphi 0, %s123
      %s126 = sphi 0, %s125
      %s140 = sphi 0, %s126
      %s148 = sphi 0, %s150
      %s151 = sphi 0, %s148
      %s152 = sphi 0, %s151
      %s168 = sphi 0, %s152
    $region4: #{tpu_custom_call.1} parent=1 // loop_header_branch
      %17 = sbr.rel (%p15) target = $region8
    $region5: #{tpu_custom_call.1} parent=1 // loop_body
      %s19 = ssub.s32 %s14, 1
      %s20 = ssub.s32 %s14, 2
      %s27 = sadd.s32 1, %s22
      %p28 = scmp.ge.s32.totalorder %s27, 1
      %s29 = scalar_select %p28, 0, %s27
      %s30 = sadd.s32 1, %s21
      %s31 = scalar_select %p28, %s30, %s21
      %p32 = scmp.ge.s32.totalorder %s31, 2
      %s33 = scalar_select %p32, 0, %s31
      %s34 = ssub.s32 %s21, %s33
      %p35 = scmp.eq.s32.totalorder %s34, 0
      %s37 = sadd.s32 %s36, 1
      %s38 = scalar_select %p35, %s36, %s37
      %p41 = pneg %p35
      %p42 = scmp.eq.s32.totalorder %s14, 1
      %p43 = por %p41, %p42
      %p44 = scmp.ne.s32.totalorder %s36, %s39
      %p45 = scmp.eq.s32.totalorder %s14, 0
      %p46 = por %p44, %p45
      %p47 = scmp.ne.s32.totalorder %s36, %s39
      %p48 = scmp.eq.s32.totalorder %s19, 1
      %p49 = por %p47, %p48
      %p50 = scmp.ne.s32.totalorder %s39, %s40
      %p51 = scmp.eq.s32.totalorder %s19, 0
      %p52 = por %p50, %p51
      %p53 = scmp.ne.s32.totalorder %s39, %s40
      %p54 = scmp.eq.s32.totalorder %s20, 1
      %p55 = por %p53, %p54
      %p57 = scmp.ne.s32.totalorder %s40, %s56
      %p58 = scmp.eq.s32.totalorder %s20, 0
      %p59 = por %p57, %p58
      %s61 = sadd.s32 %s60, 1
      %p64 = scmp.eq.s32.totalorder %s14, 1
      %p65 = scmp.ne.s32.totalorder %s60, %s62
      %p66 = scmp.eq.s32.totalorder %s14, 0
      %p67 = por %p65, %p66
      %p68 = scmp.ne.s32.totalorder %s60, %s62
      %p69 = scmp.eq.s32.totalorder %s19, 1
      %p70 = por %p68, %p69
      %p71 = scmp.ne.s32.totalorder %s62, %s63
      %p72 = scmp.eq.s32.totalorder %s19, 0
      %p73 = por %p71, %p72
      %p74 = scmp.ne.s32.totalorder %s62, %s63
      %p75 = scmp.eq.s32.totalorder %s20, 1
      %p76 = por %p74, %p75
      %p78 = scmp.ne.s32.totalorder %s63, %s77
      %p79 = scmp.eq.s32.totalorder %s20, 0
      %p80 = por %p78, %p79
      %s82 = sadd.s32 %s81, 1
      %p85 = scmp.eq.s32.totalorder %s14, 1
      %p86 = scmp.ne.s32.totalorder %s81, %s83
      %p87 = scmp.eq.s32.totalorder %s14, 0
      %p88 = por %p86, %p87
      %p89 = scmp.ne.s32.totalorder %s81, %s83
      %p90 = scmp.eq.s32.totalorder %s19, 1
      %p91 = por %p89, %p90
      %p92 = scmp.ne.s32.totalorder %s83, %s84
      %p93 = scmp.eq.s32.totalorder %s19, 0
      %p94 = por %p92, %p93
      %p95 = scmp.ne.s32.totalorder %s83, %s84
      %p96 = scmp.eq.s32.totalorder %s20, 1
      %p97 = por %p95, %p96
      %p99 = scmp.ne.s32.totalorder %s84, %s98
      %p100 = scmp.eq.s32.totalorder %s20, 0
      %p101 = por %p99, %p100
      %s103 = sadd.s32 %s102, 1
      %p106 = scmp.eq.s32.totalorder %s14, 1
      %p107 = scmp.ne.s32.totalorder %s102, %s104
      %p108 = scmp.eq.s32.totalorder %s14, 0
      %p109 = por %p107, %p108
      %p110 = scmp.ne.s32.totalorder %s102, %s104
      %p111 = scmp.eq.s32.totalorder %s19, 1
      %p112 = por %p110, %p111
      %p113 = scmp.ne.s32.totalorder %s104, %s105
      %p114 = scmp.eq.s32.totalorder %s19, 0
      %p115 = por %p113, %p114
      %p116 = scmp.ne.s32.totalorder %s104, %s105
      %p117 = scmp.eq.s32.totalorder %s20, 1
      %p118 = por %p116, %p117
      %p120 = scmp.ne.s32.totalorder %s105, %s119
      %p121 = scmp.eq.s32.totalorder %s20, 0
      %p122 = por %p120, %p121
      %s124 = sadd.s32 %s123, 1
      %p127 = scmp.eq.s32.totalorder %s14, 1
      %p128 = scmp.ne.s32.totalorder %s123, %s125
      %p129 = scmp.eq.s32.totalorder %s14, 0
      %p130 = por %p128, %p129
      %p131 = scmp.ne.s32.totalorder %s123, %s125
      %p132 = scmp.eq.s32.totalorder %s19, 1
      %p133 = por %p131, %p132
      %p134 = scmp.ne.s32.totalorder %s125, %s126
      %p135 = scmp.eq.s32.totalorder %s19, 0
      %p136 = por %p134, %p135
      %p137 = scmp.ne.s32.totalorder %s125, %s126
      %p138 = scmp.eq.s32.totalorder %s20, 1
      %p139 = por %p137, %p138
      %p141 = scmp.ne.s32.totalorder %s126, %s140
      %p142 = scmp.eq.s32.totalorder %s20, 0
      %p143 = por %p141, %p142
      %s144 = ssub.s32 %s21, %s33
      %s145 = ssub.s32 %s22, %s29
      %s146 = sor.u32 %s144, %s145
      %p147 = scmp.eq.s32.totalorder %s146, 0
      %s149 = sadd.s32 %s148, 1
      %s150 = scalar_select %p147, %s148, %s149
      %p153 = pneg %p147
      %p154 = scmp.eq.s32.totalorder %s14, 1
      %p155 = por %p153, %p154
      %p156 = scmp.ne.s32.totalorder %s148, %s151
      %p157 = scmp.eq.s32.totalorder %s14, 0
      %p158 = por %p156, %p157
      %p159 = scmp.ne.s32.totalorder %s148, %s151
      %p160 = scmp.eq.s32.totalorder %s19, 1
      %p161 = por %p159, %p160
      %p162 = scmp.ne.s32.totalorder %s151, %s152
      %p163 = scmp.eq.s32.totalorder %s19, 0
      %p164 = por %p162, %p163
      %p165 = scmp.ne.s32.totalorder %s151, %s152
      %p166 = scmp.eq.s32.totalorder %s20, 1
      %p167 = por %p165, %p166
      %p169 = scmp.ne.s32.totalorder %s152, %s168
      %p170 = scmp.eq.s32.totalorder %s20, 0
      %p171 = por %p169, %p170
      %p172 = scmp.le.s32.totalorder 1, %s14
      %p173 = scmp.lt.s32.totalorder %s14, 3
      %p174 = pnand %p172, %p173
      %p175 = pneg %p174
      // Predicated region
      $region9: #{tpu_custom_call.1} parent=5 // pred_check
        _
      $region10: #{tpu_custom_call.1} parent=5 // pred_check_branch
        %177 = sbr.rel (%p174) target = $region12
      $region11: #{tpu_custom_call.1} parent=5 // pred_region
        %s178 = ssub.s32 %s14, 1
        // Predicated region
        $region13: #{tpu_custom_call.1} parent=11 // pred_check
          %p179 = pneg %p73
        $region14: #{tpu_custom_call.1} parent=11 // pred_check_branch
          %181 = sbr.rel (%p179) target = $region16
        $region15: #{tpu_custom_call.1} parent=11 // pred_region
          _
        $region16: #{tpu_custom_call.1} parent=11 // pred_fallthru
          _
        // Predicated region
        $region17: #{tpu_custom_call.1} parent=11 // pred_check
          %p182 = pneg %p94
        $region18: #{tpu_custom_call.1} parent=11 // pred_check_branch
          %184 = sbr.rel (%p182) target = $region20
        $region19: #{tpu_custom_call.1} parent=11 // pred_region
          _
        $region20: #{tpu_custom_call.1} parent=11 // pred_fallthru
          _
        // Predicated region
        $region21: #{tpu_custom_call.1} parent=11 // pred_check
          %p185 = pneg %p115
        $region22: #{tpu_custom_call.1} parent=11 // pred_check_branch
          %187 = sbr.rel (%p185) target = $region24
        $region23: #{tpu_custom_call.1} parent=11 // pred_region
          _
        $region24: #{tpu_custom_call.1} parent=11 // pred_fallthru
          _
        // Predicated region
        $region25: #{tpu_custom_call.1} parent=11 // pred_check
          %p188 = pneg %p136
        $region26: #{tpu_custom_call.1} parent=11 // pred_check_branch
          %190 = sbr.rel (%p188) target = $region28
        $region27: #{tpu_custom_call.1} parent=11 // pred_region
          _
        $region28: #{tpu_custom_call.1} parent=11 // pred_fallthru
          _
      $region12: #{tpu_custom_call.1} parent=5 // pred_fallthru
        _
      %p191 = scmp.lt.s32.totalorder %s14, 2
      // Predicated region
      $region29: #{tpu_custom_call.1} parent=5 // pred_check
        %p192 = pneg %p191
      $region30: #{tpu_custom_call.1} parent=5 // pred_check_branch
        %194 = sbr.rel (%p192) target = $region32
      $region31: #{tpu_custom_call.1} parent=5 // pred_region
        // Predicated region
        $region33: #{tpu_custom_call.1} parent=31 // pred_check
          %p195 = pneg %p46
        $region34: #{tpu_custom_call.1} parent=31 // pred_check_branch
          %197 = sbr.rel (%p195) target = $region36
        $region35: #{tpu_custom_call.1} parent=31 // pred_region
          %p198 = scmp.lt.s32.totalorder %s21, 1
          %s199 = scalar_select %p198, %s21, 1
          %s200 = smul.addr %s199, 4
          %s201 = scalar_lea.vmem %s0, %s200
        $region36: #{tpu_custom_call.1} parent=31 // pred_fallthru
          _
      $region32: #{tpu_custom_call.1} parent=5 // pred_fallthru
        _
      %p202 = scmp.le.s32.totalorder 1, %s14
      %p203 = scmp.lt.s32.totalorder %s14, 3
      %p204 = pnand %p202, %p203
      %p205 = pneg %p204
      // Predicated region
      $region37: #{tpu_custom_call.1} parent=5 // pred_check
        _
      $region38: #{tpu_custom_call.1} parent=5 // pred_check_branch
        %207 = sbr.rel (%p204) target = $region40
      $region39: #{tpu_custom_call.1} parent=5 // pred_region
        %s208 = ssub.s32 %s14, 1
        %p209 = scmp.lt.s32.totalorder %s23, 1
        %s210 = scalar_select %p209, %s23, 1
        %s211 = smul.addr %s210, 4
        %s212 = scalar_lea.vmem %s0, %s211
        %p213 = pneg %p52
        %p214 = pneg %p49
        %p215 = pneg %p73
        %p216 = pneg %p70
        %p217 = pneg %p94
        %p218 = pneg %p91
        %p219 = pneg %p115
        %p220 = pneg %p112
        %p221 = pneg %p136
        %p222 = pneg %p133
        %p223 = pneg %p164
        %p224 = pneg %p161
        %s225 = sand.u32 %s151, 1
        %s226 = scalar_lea.sflag [#allocation4], %s225
        %s227 = sand.u32 %s151, 1
        %s228 = smul.addr %s227, 8
        %s229 = scalar_lea.vmem [#allocation3], %s228
        %p230 = scmp.lt.s32.totalorder %s23, 1
        %s231 = scalar_select %p230, %s23, 1
        %s232 = smul.addr %s231, 4
        %s233 = scalar_lea.vmem %s0, %s232
        %p235 = scmp.eq.s32.totalorder %s24, 0
        // Predicated region
        $region41: #{tpu_custom_call.1} parent=39 // pred_check
          %p236 = pneg %p235
        $region42: #{tpu_custom_call.1} parent=39 // pred_check_branch
          %238 = sbr.rel (%p236) target = $region44
        $region43: #{tpu_custom_call.1} parent=39 // pred_region
          %v239 = vld [vmem:[%s233] sm:$0xf]
          loop: start=0, step=1, limit=2
          $region45: #{tpu_custom_call.1} parent=43 // loop_pre_header
            _
          $region46: #{tpu_custom_call.1} parent=43 // loop_header
            %s241 = sphi 0, %s245
            %p242 = scmp.ge.s32.totalorder %s241, 2
          $region47: #{tpu_custom_call.1} parent=43 // loop_header_branch
            %244 = sbr.rel (%p242) target = $region51
          $region48: #{tpu_custom_call.1} parent=43 // loop_body
            %s246 = smul.u32 %s241, 8
            %s247 = smul.u32 %s246, 4
            %s248 = smul.addr %s247, 4
            %s249 = scalar_lea.vmem %s2, %s248
            %v250 = vld [vmem:[%s249] sm:$0xf]
            %v251 = vld [vmem:[%s249 + $0x4] sm:$0xf]
            %v252 = vld [vmem:[%s249 + $0x8] sm:$0xf]
            %v253 = vld [vmem:[%s249 + $0xc] sm:$0xf]
            %v254 = vld [vmem:[%s249 + $0x10] sm:$0xf]
            %v255 = vld [vmem:[%s249 + $0x14] sm:$0xf]
            %v256 = vld [vmem:[%s249 + $0x18] sm:$0xf]
            %v257 = vld [vmem:[%s249 + $0x1c] sm:$0xf]
            %v258 = vld [vmem:[%s249 + $0x20] sm:$0xf]
            %v259 = vld [vmem:[%s249 + $0x24] sm:$0xf]
            %v260 = vld [vmem:[%s249 + $0x28] sm:$0xf]
            %v261 = vld [vmem:[%s249 + $0x2c] sm:$0xf]
            %v262 = vld [vmem:[%s249 + $0x30] sm:$0xf]
            %v263 = vld [vmem:[%s249 + $0x34] sm:$0xf]
            %v264 = vld [vmem:[%s249 + $0x38] sm:$0xf]
            %v265 = vld [vmem:[%s249 + $0x3c] sm:$0xf]
            %v266 = vld [vmem:[%s249 + $0x40] sm:$0xf]
            %v267 = vld [vmem:[%s249 + $0x44] sm:$0xf]
            %v268 = vld [vmem:[%s249 + $0x48] sm:$0xf]
            %v269 = vld [vmem:[%s249 + $0x4c] sm:$0xf]
            %v270 = vld [vmem:[%s249 + $0x50] sm:$0xf]
            %v271 = vld [vmem:[%s249 + $0x54] sm:$0xf]
            %v272 = vld [vmem:[%s249 + $0x58] sm:$0xf]
            %v273 = vld [vmem:[%s249 + $0x5c] sm:$0xf]
            %v274 = vld [vmem:[%s249 + $0x60] sm:$0xf]
            %v275 = vld [vmem:[%s249 + $0x64] sm:$0xf]
            %v276 = vld [vmem:[%s249 + $0x68] sm:$0xf]
            %v277 = vld [vmem:[%s249 + $0x6c] sm:$0xf]
            %v278 = vld [vmem:[%s249 + $0x70] sm:$0xf]
            %v279 = vld [vmem:[%s249 + $0x74] sm:$0xf]
            %v280 = vld [vmem:[%s249 + $0x78] sm:$0xf]
            %v281 = vld [vmem:[%s249 + $0x7c] sm:$0xf]
            %v286 = vunpack.c.l.b16 %v250
            %v287 = vunpack.c.l.b16 %v251
            %v288 = vunpack.c.l.b16 %v252
            %v289 = vunpack.c.l.b16 %v253
            %v290 = vpack.c.b16 %v287, %v286
            %v291 = vpack.c.b16 %v289, %v288
            %vm294 = vcmask 261120
            %v296 = vsel %vm294, %v239, 0
            %298 = vmatprep.subr.bf16.mxu0 0
            %299 = vmatpush1.bf16.msra.mxu0 %v290
            %300 = vmatprep.subr.bf16.mxu0 0
            %301 = vmatpush1.bf16.msra.mxu0 %v291
            %302 = vmatprep.subr.bf16.mxu0 0
            %303 = vmatpush1.bf16.msra.mxu0 0
            %304 = vmatprep.subr.bf16.mxu0 0
            %305 = vmatpush1.bf16.msra.mxu0 0
            %306 = vmatprep.subr.bf16.mxu0 0
            %307 = vmatpush1.bf16.msra.mxu0 0
            %308 = vmatprep.subr.bf16.mxu0 0
            %309 = vmatpush1.bf16.msra.mxu0 0
            %310 = vmatprep.subr.bf16.mxu0 0
            %311 = vmatpush1.bf16.msra.mxu0 0
            %312 = vmatprep.subr.bf16.mxu0 0
            %313 = vmatpush1.bf16.msra.mxu0 0
            %314 = vmatprep.subr.bf16.mxu0 0
            %315 = vmatpush1.bf16.msra.mxu0 0
            %316 = vmatprep.subr.bf16.mxu0 0
            %317 = vmatpush1.bf16.msra.mxu0 0
            %318 = vmatprep.subr.bf16.mxu0 0
            %319 = vmatpush1.bf16.msra.mxu0 0
            %320 = vmatprep.subr.bf16.mxu0 0
            %321 = vmatpush1.bf16.msra.mxu0 0
            %322 = vmatprep.subr.bf16.mxu0 0
            %323 = vmatpush1.bf16.msra.mxu0 0
            %324 = vmatprep.subr.bf16.mxu0 0
            %325 = vmatpush1.bf16.msra.mxu0 0
            %326 = vmatprep.subr.bf16.mxu0 0
            %327 = vmatpush1.bf16.msra.mxu0 0
            %328 = vmatprep.subr.bf16.mxu0 0
            %329 = vmatpush1.bf16.msra.mxu0 0
            %330 = vmatprep.mubr.bf16.mxu0 0
            %331 = vmatmul.mubr.bf16.gmra.mrb[0].mxu0 %v296
            %v332 = vpop.f32.mrb[0].mxu0
            %v333 = vadd.f32 0.0, %v332
            %v334 = vpop.f32.mrb[0].mxu0
            %v335 = vpop.f32.mrb[0].mxu0
            %v336 = vpop.f32.mrb[0].mxu0
            %337 = vdwg.mxu0
            %v342 = vunpack.c.l.b16 %v254
            %v343 = vunpack.c.l.b16 %v255
            %v344 = vunpack.c.l.b16 %v256
            %v345 = vunpack.c.l.b16 %v257
            %v346 = vpack.c.b16 %v343, %v342
            %v347 = vpack.c.b16 %v345, %v344
            %350 = vmatprep.subr.bf16.mxu0 0
            %351 = vmatpush1.bf16.msra.mxu0 %v346
            %352 = vmatprep.subr.bf16.mxu0 0
            %353 = vmatpush1.bf16.msra.mxu0 %v347
            %354 = vmatprep.subr.bf16.mxu0 0
            %355 = vmatpush1.bf16.msra.mxu0 0
            %356 = vmatprep.subr.bf16.mxu0 0
            %357 = vmatpush1.bf16.msra.mxu0 0
            %358 = vmatprep.subr.bf16.mxu0 0
            %359 = vmatpush1.bf16.msra.mxu0 0
            %360 = vmatprep.subr.bf16.mxu0 0
            %361 = vmatpush1.bf16.msra.mxu0 0
            %362 = vmatprep.subr.bf16.mxu0 0
            %363 = vmatpush1.bf16.msra.mxu0 0
            %364 = vmatprep.subr.bf16.mxu0 0
            %365 = vmatpush1.bf16.msra.mxu0 0
            %366 = vmatprep.subr.bf16.mxu0 0
            %367 = vmatpush1.bf16.msra.mxu0 0
            %368 = vmatprep.subr.bf16.mxu0 0
            %369 = vmatpush1.bf16.msra.mxu0 0
            %370 = vmatprep.subr.bf16.mxu0 0
            %371 = vmatpush1.bf16.msra.mxu0 0
            %372 = vmatprep.subr.bf16.mxu0 0
            %373 = vmatpush1.bf16.msra.mxu0 0
            %374 = vmatprep.subr.bf16.mxu0 0
            %375 = vmatpush1.bf16.msra.mxu0 0
            %376 = vmatprep.subr.bf16.mxu0 0
            %377 = vmatpush1.bf16.msra.mxu0 0
            %378 = vmatprep.subr.bf16.mxu0 0
            %379 = vmatpush1.bf16.msra.mxu0 0
            %380 = vmatprep.subr.bf16.mxu0 0
            %381 = vmatpush1.bf16.msra.mxu0 0
            %382 = vmatprep.mubr.bf16.mxu0 0
            %383 = vmatmul.mubr.bf16.gmra.mrb[0].mxu0 %v296
            %v384 = vpop.f32.mrb[0].mxu0
            %v385 = vadd.f32 0.0, %v384
            %v386 = vpop.f32.mrb[0].mxu0
            %v387 = vpop.f32.mrb[0].mxu0
            %v388 = vpop.f32.mrb[0].mxu0
            %389 = vdwg.mxu0
            %v394 = vunpack.c.l.b16 %v258
            %v395 = vunpack.c.l.b16 %v259
            %v396 = vunpack.c.l.b16 %v260
            %v397 = vunpack.c.l.b16 %v261
            %v398 = vpack.c.b16 %v395, %v394
            %v399 = vpack.c.b16 %v397, %v396
            %402 = vmatprep.subr.bf16.mxu0 0
            %403 = vmatpush1.bf16.msra.mxu0 %v398
            %404 = vmatprep.subr.bf16.mxu0 0
            %405 = vmatpush1.bf16.msra.mxu0 %v399
            %406 = vmatprep.subr.bf16.mxu0 0
            %407 = vmatpush1.bf16.msra.mxu0 0
            %408 = vmatprep.subr.bf16.mxu0 0
            %409 = vmatpush1.bf16.msra.mxu0 0
            %410 = vmatprep.subr.bf16.mxu0 0
            %411 = vmatpush1.bf16.msra.mxu0 0
            %412 = vmatprep.subr.bf16.mxu0 0
            %413 = vmatpush1.bf16.msra.mxu0 0
            %414 = vmatprep.subr.bf16.mxu0 0
            %415 = vmatpush1.bf16.msra.mxu0 0
            %416 = vmatprep.subr.bf16.mxu0 0
            %417 = vmatpush1.bf16.msra.mxu0 0
            %418 = vmatprep.subr.bf16.mxu0 0
            %419 = vmatpush1.bf16.msra.mxu0 0
            %420 = vmatprep.subr.bf16.mxu0 0
            %421 = vmatpush1.bf16.msra.mxu0 0
            %422 = vmatprep.subr.bf16.mxu0 0
            %423 = vmatpush1.bf16.msra.mxu0 0
            %424 = vmatprep.subr.bf16.mxu0 0
            %425 = vmatpush1.bf16.msra.mxu0 0
            %426 = vmatprep.subr.bf16.mxu0 0
            %427 = vmatpush1.bf16.msra.mxu0 0
            %428 = vmatprep.subr.bf16.mxu0 0
            %429 = vmatpush1.bf16.msra.mxu0 0
            %430 = vmatprep.subr.bf16.mxu0 0
            %431 = vmatpush1.bf16.msra.mxu0 0
            %432 = vmatprep.subr.bf16.mxu0 0
            %433 = vmatpush1.bf16.msra.mxu0 0
            %434 = vmatprep.mubr.bf16.mxu0 0
            %435 = vmatmul.mubr.bf16.gmra.mrb[0].mxu0 %v296
            %v436 = vpop.f32.mrb[0].mxu0
            %v437 = vadd.f32 0.0, %v436
            %v438 = vpop.f32.mrb[0].mxu0
            %v439 = vpop.f32.mrb[0].mxu0
            %v440 = vpop.f32.mrb[0].mxu0
            %441 = vdwg.mxu0
            %v446 = vunpack.c.l.b16 %v262
            %v447 = vunpack.c.l.b16 %v263
            %v448 = vunpack.c.l.b16 %v264
            %v449 = vunpack.c.l.b16 %v265
            %v450 = vpack.c.b16 %v447, %v446
            %v451 = vpack.c.b16 %v449, %v448
            %454 = vmatprep.subr.bf16.mxu0 0
            %455 = vmatpush1.bf16.msra.mxu0 %v450
            %456 = vmatprep.subr.bf16.mxu0 0
            %457 = vmatpush1.bf16.msra.mxu0 %v451
            %458 = vmatprep.subr.bf16.mxu0 0
            %459 = vmatpush1.bf16.msra.mxu0 0
            %460 = vmatprep.subr.bf16.mxu0 0
            %461 = vmatpush1.bf16.msra.mxu0 0
            %462 = vmatprep.subr.bf16.mxu0 0
            %463 = vmatpush1.bf16.msra.mxu0 0
            %464 = vmatprep.subr.bf16.mxu0 0
            %465 = vmatpush1.bf16.msra.mxu0 0
            %466 = vmatprep.subr.bf16.mxu0 0
            %467 = vmatpush1.bf16.msra.mxu0 0
            %468 = vmatprep.subr.bf16.mxu0 0
            %469 = vmatpush1.bf16.msra.mxu0 0
            %470 = vmatprep.subr.bf16.mxu0 0
            %471 = vmatpush1.bf16.msra.mxu0 0
            %472 = vmatprep.subr.bf16.mxu0 0
            %473 = vmatpush1.bf16.msra.mxu0 0
            %474 = vmatprep.subr.bf16.mxu0 0
            %475 = vmatpush1.bf16.msra.mxu0 0
            %476 = vmatprep.subr.bf16.mxu0 0
            %477 = vmatpush1.bf16.msra.mxu0 0
            %478 = vmatprep.subr.bf16.mxu0 0
            %479 = vmatpush1.bf16.msra.mxu0 0
            %480 = vmatprep.subr.bf16.mxu0 0
            %481 = vmatpush1.bf16.msra.mxu0 0
            %482 = vmatprep.subr.bf16.mxu0 0
            %483 = vmatpush1.bf16.msra.mxu0 0
            %484 = vmatprep.subr.bf16.mxu0 0
            %485 = vmatpush1.bf16.msra.mxu0 0
            %486 = vmatprep.mubr.bf16.mxu0 0
            %487 = vmatmul.mubr.bf16.gmra.mrb[0].mxu0 %v296
            %v488 = vpop.f32.mrb[0].mxu0
            %v489 = vadd.f32 0.0, %v488
            %v490 = vpop.f32.mrb[0].mxu0
            %v491 = vpop.f32.mrb[0].mxu0
            %v492 = vpop.f32.mrb[0].mxu0
            %493 = vdwg.mxu0
            %v498 = vunpack.c.l.b16 %v266
            %v499 = vunpack.c.l.b16 %v267
            %v500 = vunpack.c.l.b16 %v268
            %v501 = vunpack.c.l.b16 %v269
            %v502 = vpack.c.b16 %v499, %v498
            %v503 = vpack.c.b16 %v501, %v500
            %506 = vmatprep.subr.bf16.mxu0 0
            %507 = vmatpush1.bf16.msra.mxu0 %v502
            %508 = vmatprep.subr.bf16.mxu0 0
            %509 = vmatpush1.bf16.msra.mxu0 %v503
            %510 = vmatprep.subr.bf16.mxu0 0
            %511 = vmatpush1.bf16.msra.mxu0 0
            %512 = vmatprep.subr.bf16.mxu0 0
            %513 = vmatpush1.bf16.msra.mxu0 0
            %514 = vmatprep.subr.bf16.mxu0 0
            %515 = vmatpush1.bf16.msra.mxu0 0
            %516 = vmatprep.subr.bf16.mxu0 0
            %517 = vmatpush1.bf16.msra.mxu0 0
            %518 = vmatprep.subr.bf16.mxu0 0
            %519 = vmatpush1.bf16.msra.mxu0 0
            %520 = vmatprep.subr.bf16.mxu0 0
            %521 = vmatpush1.bf16.msra.mxu0 0
            %522 = vmatprep.subr.bf16.mxu0 0
            %523 = vmatpush1.bf16.msra.mxu0 0
            %524 = vmatprep.subr.bf16.mxu0 0
            %525 = vmatpush1.bf16.msra.mxu0 0
            %526 = vmatprep.subr.bf16.mxu0 0
            %527 = vmatpush1.bf16.msra.mxu0 0
            %528 = vmatprep.subr.bf16.mxu0 0
            %529 = vmatpush1.bf16.msra.mxu0 0
            %530 = vmatprep.subr.bf16.mxu0 0
            %531 = vmatpush1.bf16.msra.mxu0 0
            %532 = vmatprep.subr.bf16.mxu0 0
            %533 = vmatpush1.bf16.msra.mxu0 0
            %534 = vmatprep.subr.bf16.mxu0 0
            %535 = vmatpush1.bf16.msra.mxu0 0
            %536 = vmatprep.subr.bf16.mxu0 0
            %537 = vmatpush1.bf16.msra.mxu0 0
            %538 = vmatprep.mubr.bf16.mxu0 0
            %539 = vmatmul.mubr.bf16.gmra.mrb[0].mxu0 %v296
            %v540 = vpop.f32.mrb[0].mxu0
            %v541 = vadd.f32 0.0, %v540
            %v542 = vpop.f32.mrb[0].mxu0
            %v543 = vpop.f32.mrb[0].mxu0
            %v544 = vpop.f32.mrb[0].mxu0
            %545 = vdwg.mxu0
            %v550 = vunpack.c.l.b16 %v270
            %v551 = vunpack.c.l.b16 %v271
            %v552 = vunpack.c.l.b16 %v272
            %v553 = vunpack.c.l.b16 %v273
            %v554 = vpack.c.b16 %v551, %v550
            %v555 = vpack.c.b16 %v553, %v552
            %558 = vmatprep.subr.bf16.mxu0 0
            %559 = vmatpush1.bf16.msra.mxu0 %v554
            %560 = vmatprep.subr.bf16.mxu0 0
            %561 = vmatpush1.bf16.msra.mxu0 %v555
            %562 = vmatprep.subr.bf16.mxu0 0
            %563 = vmatpush1.bf16.msra.mxu0 0
            %564 = vmatprep.subr.bf16.mxu0 0
            %565 = vmatpush1.bf16.msra.mxu0 0
            %566 = vmatprep.subr.bf16.mxu0 0
            %567 = vmatpush1.bf16.msra.mxu0 0
            %568 = vmatprep.subr.bf16.mxu0 0
            %569 = vmatpush1.bf16.msra.mxu0 0
            %570 = vmatprep.subr.bf16.mxu0 0
            %571 = vmatpush1.bf16.msra.mxu0 0
            %572 = vmatprep.subr.bf16.mxu0 0
            %573 = vmatpush1.bf16.msra.mxu0 0
            %574 = vmatprep.subr.bf16.mxu0 0
            %575 = vmatpush1.bf16.msra.mxu0 0
            %576 = vmatprep.subr.bf16.mxu0 0
            %577 = vmatpush1.bf16.msra.mxu0 0
            %578 = vmatprep.subr.bf16.mxu0 0
            %579 = vmatpush1.bf16.msra.mxu0 0
            %580 = vmatprep.subr.bf16.mxu0 0
            %581 = vmatpush1.bf16.msra.mxu0 0
            %582 = vmatprep.subr.bf16.mxu0 0
            %583 = vmatpush1.bf16.msra.mxu0 0
            %584 = vmatprep.subr.bf16.mxu0 0
            %585 = vmatpush1.bf16.msra.mxu0 0
            %586 = vmatprep.subr.bf16.mxu0 0
            %587 = vmatpush1.bf16.msra.mxu0 0
            %588 = vmatprep.subr.bf16.mxu0 0
            %589 = vmatpush1.bf16.msra.mxu0 0
            %590 = vmatprep.mubr.bf16.mxu0 0
            %591 = vmatmul.mubr.bf16.gmra.mrb[0].mxu0 %v296
            %v592 = vpop.f32.mrb[0].mxu0
            %v593 = vadd.f32 0.0, %v592
            %v594 = vpop.f32.mrb[0].mxu0
            %v595 = vpop.f32.mrb[0].mxu0
            %v596 = vpop.f32.mrb[0].mxu0
            %597 = vdwg.mxu0
            %v602 = vunpack.c.l.b16 %v274
            %v603 = vunpack.c.l.b16 %v275
            %v604 = vunpack.c.l.b16 %v276
            %v605 = vunpack.c.l.b16 %v277
            %v606 = vpack.c.b16 %v603, %v602
            %v607 = vpack.c.b16 %v605, %v604
            %610 = vmatprep.subr.bf16.mxu0 0
            %611 = vmatpush1.bf16.msra.mxu0 %v606
            %612 = vmatprep.subr.bf16.mxu0 0
            %613 = vmatpush1.bf16.msra.mxu0 %v607
            %614 = vmatprep.subr.bf16.mxu0 0
            %615 = vmatpush1.bf16.msra.mxu0 0
            %616 = vmatprep.subr.bf16.mxu0 0
            %617 = vmatpush1.bf16.msra.mxu0 0
            %618 = vmatprep.subr.bf16.mxu0 0
            %619 = vmatpush1.bf16.msra.mxu0 0
            %620 = vmatprep.subr.bf16.mxu0 0
            %621 = vmatpush1.bf16.msra.mxu0 0
            %622 = vmatprep.subr.bf16.mxu0 0
            %623 = vmatpush1.bf16.msra.mxu0 0
            %624 = vmatprep.subr.bf16.mxu0 0
            %625 = vmatpush1.bf16.msra.mxu0 0
            %626 = vmatprep.subr.bf16.mxu0 0
            %627 = vmatpush1.bf16.msra.mxu0 0
            %628 = vmatprep.subr.bf16.mxu0 0
            %629 = vmatpush1.bf16.msra.mxu0 0
            %630 = vmatprep.subr.bf16.mxu0 0
            %631 = vmatpush1.bf16.msra.mxu0 0
            %632 = vmatprep.subr.bf16.mxu0 0
            %633 = vmatpush1.bf16.msra.mxu0 0
            %634 = vmatprep.subr.bf16.mxu0 0
            %635 = vmatpush1.bf16.msra.mxu0 0
            %636 = vmatprep.subr.bf16.mxu0 0
            %637 = vmatpush1.bf16.msra.mxu0 0
            %638 = vmatprep.subr.bf16.mxu0 0
            %639 = vmatpush1.bf16.msra.mxu0 0
            %640 = vmatprep.subr.bf16.mxu0 0
            %641 = vmatpush1.bf16.msra.mxu0 0
            %642 = vmatprep.mubr.bf16.mxu0 0
            %643 = vmatmul.mubr.bf16.gmra.mrb[0].mxu0 %v296
            %v644 = vpop.f32.mrb[0].mxu0
            %v645 = vadd.f32 0.0, %v644
            %v646 = vpop.f32.mrb[0].mxu0
            %v647 = vpop.f32.mrb[0].mxu0
            %v648 = vpop.f32.mrb[0].mxu0
            %649 = vdwg.mxu0
            %v654 = vunpack.c.l.b16 %v278
            %v655 = vunpack.c.l.b16 %v279
            %v656 = vunpack.c.l.b16 %v280
            %v657 = vunpack.c.l.b16 %v281
            %v658 = vpack.c.b16 %v655, %v654
            %v659 = vpack.c.b16 %v657, %v656
            %662 = vmatprep.subr.bf16.mxu0 0
            %663 = vmatpush1.bf16.msra.mxu0 %v658
            %664 = vmatprep.subr.bf16.mxu0 0
            %665 = vmatpush1.bf16.msra.mxu0 %v659
            %666 = vmatprep.subr.bf16.mxu0 0
            %667 = vmatpush1.bf16.msra.mxu0 0
            %668 = vmatprep.subr.bf16.mxu0 0
            %669 = vmatpush1.bf16.msra.mxu0 0
            %670 = vmatprep.subr.bf16.mxu0 0
            %671 = vmatpush1.bf16.msra.mxu0 0
            %672 = vmatprep.subr.bf16.mxu0 0
            %673 = vmatpush1.bf16.msra.mxu0 0
            %674 = vmatprep.subr.bf16.mxu0 0
            %675 = vmatpush1.bf16.msra.mxu0 0
            %676 = vmatprep.subr.bf16.mxu0 0
            %677 = vmatpush1.bf16.msra.mxu0 0
            %678 = vmatprep.subr.bf16.mxu0 0
            %679 = vmatpush1.bf16.msra.mxu0 0
            %680 = vmatprep.subr.bf16.mxu0 0
            %681 = vmatpush1.bf16.msra.mxu0 0
            %682 = vmatprep.subr.bf16.mxu0 0
            %683 = vmatpush1.bf16.msra.mxu0 0
            %684 = vmatprep.subr.bf16.mxu0 0
            %685 = vmatpush1.bf16.msra.mxu0 0
            %686 = vmatprep.subr.bf16.mxu0 0
            %687 = vmatpush1.bf16.msra.mxu0 0
            %688 = vmatprep.subr.bf16.mxu0 0
            %689 = vmatpush1.bf16.msra.mxu0 0
            %690 = vmatprep.subr.bf16.mxu0 0
            %691 = vmatpush1.bf16.msra.mxu0 0
            %692 = vmatprep.subr.bf16.mxu0 0
            %693 = vmatpush1.bf16.msra.mxu0 0
            %694 = vmatprep.mubr.bf16.mxu0 0
            %695 = vmatmul.mubr.bf16.gmra.mrb[0].mxu0 %v296
            %v696 = vpop.f32.mrb[0].mxu0
            %v697 = vadd.f32 0.0, %v696
            %v698 = vpop.f32.mrb[0].mxu0
            %v699 = vpop.f32.mrb[0].mxu0
            %v700 = vpop.f32.mrb[0].mxu0
            %701 = vdwg.mxu0
            %v702 = vpack.c.bf16 %v333, %v333
            %v703 = vpack.c.bf16 %v385, %v385
            %v704 = vpack.c.bf16 %v437, %v437
            %v705 = vpack.c.bf16 %v489, %v489
            %v706 = vpack.c.bf16 %v541, %v541
            %v707 = vpack.c.bf16 %v593, %v593
            %v708 = vpack.c.bf16 %v645, %v645
            %v709 = vpack.c.bf16 %v697, %v697
            %s710 = sadd.s32 0, %s246
            %s711 = smul.addr %s710, 4
            %s712 = scalar_lea.vmem [#allocation2], %s711
            %vm713 = vcmask 27648
            %714 = vst.msk [vmem:[%s712] sm:$0xf] %vm713, %v702
            %715 = vst.msk [vmem:[%s712 + $0x4] sm:$0xf] %vm713, %v703
            %716 = vst.msk [vmem:[%s712 + $0x8] sm:$0xf] %vm713, %v704
            %717 = vst.msk [vmem:[%s712 + $0xc] sm:$0xf] %vm713, %v705
            %718 = vst.msk [vmem:[%s712 + $0x10] sm:$0xf] %vm713, %v706
            %719 = vst.msk [vmem:[%s712 + $0x14] sm:$0xf] %vm713, %v707
            %720 = vst.msk [vmem:[%s712 + $0x18] sm:$0xf] %vm713, %v708
            %721 = vst.msk [vmem:[%s712 + $0x1c] sm:$0xf] %vm713, %v709
          $region49: #{tpu_custom_call.1} parent=43 // loop_footer
            %s245 = sadd.s32 1, %s241
          $region50: #{tpu_custom_call.1} parent=43 // loop_footer_branch
            %240 = sbr.rel target = $region46
          $region51: #{tpu_custom_call.1} parent=43 // loop_exit
            _
        $region44: #{tpu_custom_call.1} parent=39 // pred_fallthru
          _
        %s722 = smul.u32 %s24, 8
        %s723 = sshra.s32 %s722, 3
        %s724 = sand.u32 %s722, 7
        %s725 = smul.addr %s723, 4
        %s726 = scalar_lea.vmem %s233, %s725
        %v727 = vld [vmem:[%s726] sm:$0xf]
        %s728 = smul.u32 0, 4
        %s729 = smul.addr %s728, 4
        %s730 = scalar_lea.vmem %s1, %s729
        %v731 = vld [vmem:[%s730] sm:$0xf]
        %v732 = vld [vmem:[%s730 + $0x4] sm:$0xf]
        %v733 = vld [vmem:[%s730 + $0x8] sm:$0xf]
        %v734 = vld [vmem:[%s730 + $0xc] sm:$0xf]
        %v735 = vld [vmem:[%s730 + $0x10] sm:$0xf]
        %v736 = vld [vmem:[%s730 + $0x14] sm:$0xf]
        %v737 = vld [vmem:[%s730 + $0x18] sm:$0xf]
        %v738 = vld [vmem:[%s730 + $0x1c] sm:$0xf]
        %v739 = vld [vmem:[%s730 + $0x20] sm:$0xf]
        %v740 = vld [vmem:[%s730 + $0x24] sm:$0xf]
        %v741 = vld [vmem:[%s730 + $0x28] sm:$0xf]
        %v742 = vld [vmem:[%s730 + $0x2c] sm:$0xf]
        %v743 = vld [vmem:[%s730 + $0x30] sm:$0xf]
        %v744 = vld [vmem:[%s730 + $0x34] sm:$0xf]
        %v745 = vld [vmem:[%s730 + $0x38] sm:$0xf]
        %v746 = vld [vmem:[%s730 + $0x3c] sm:$0xf]
        %v747 = vld [vmem:[%s730 + $0x40] sm:$0xf]
        %v748 = vld [vmem:[%s730 + $0x44] sm:$0xf]
        %v749 = vld [vmem:[%s730 + $0x48] sm:$0xf]
        %v750 = vld [vmem:[%s730 + $0x4c] sm:$0xf]
        %v751 = vld [vmem:[%s730 + $0x50] sm:$0xf]
        %v752 = vld [vmem:[%s730 + $0x54] sm:$0xf]
        %v753 = vld [vmem:[%s730 + $0x58] sm:$0xf]
        %v754 = vld [vmem:[%s730 + $0x5c] sm:$0xf]
        %v755 = vld [vmem:[%s730 + $0x60] sm:$0xf]
        %v756 = vld [vmem:[%s730 + $0x64] sm:$0xf]
        %v757 = vld [vmem:[%s730 + $0x68] sm:$0xf]
        %v758 = vld [vmem:[%s730 + $0x6c] sm:$0xf]
        %v759 = vld [vmem:[%s730 + $0x70] sm:$0xf]
        %v760 = vld [vmem:[%s730 + $0x74] sm:$0xf]
        %v761 = vld [vmem:[%s730 + $0x78] sm:$0xf]
        %v762 = vld [vmem:[%s730 + $0x7c] sm:$0xf]
        %v767 = vunpack.c.l.b16 %v731
        %v768 = vunpack.c.l.b16 %v732
        %v769 = vunpack.c.l.b16 %v733
        %v770 = vunpack.c.l.b16 %v734
        %v771 = vpack.c.b16 %v768, %v767
        %v772 = vpack.c.b16 %v770, %v769
        %vm775 = vcmask 261120
        %v777 = vsel %vm775, %v727, 0
        %779 = vmatprep.subr.bf16.mxu0 0
        %780 = vmatpush1.bf16.msra.mxu0 %v771
        %781 = vmatprep.subr.bf16.mxu0 0
        %782 = vmatpush1.bf16.msra.mxu0 %v772
        %783 = vmatprep.subr.bf16.mxu0 0
        %784 = vmatpush1.bf16.msra.mxu0 0
        %785 = vmatprep.subr.bf16.mxu0 0
        %786 = vmatpush1.bf16.msra.mxu0 0
        %787 = vmatprep.subr.bf16.mxu0 0
        %788 = vmatpush1.bf16.msra.mxu0 0
        %789 = vmatprep.subr.bf16.mxu0 0
        %790 = vmatpush1.bf16.msra.mxu0 0
        %791 = vmatprep.subr.bf16.mxu0 0
        %792 = vmatpush1.bf16.msra.mxu0 0
        %793 = vmatprep.subr.bf16.mxu0 0
        %794 = vmatpush1.bf16.msra.mxu0 0
        %795 = vmatprep.subr.bf16.mxu0 0
        %796 = vmatpush1.bf16.msra.mxu0 0
        %797 = vmatprep.subr.bf16.mxu0 0
        %798 = vmatpush1.bf16.msra.mxu0 0
        %799 = vmatprep.subr.bf16.mxu0 0
        %800 = vmatpush1.bf16.msra.mxu0 0
        %801 = vmatprep.subr.bf16.mxu0 0
        %802 = vmatpush1.bf16.msra.mxu0 0
        %803 = vmatprep.subr.bf16.mxu0 0
        %804 = vmatpush1.bf16.msra.mxu0 0
        %805 = vmatprep.subr.bf16.mxu0 0
        %806 = vmatpush1.bf16.msra.mxu0 0
        %807 = vmatprep.subr.bf16.mxu0 0
        %808 = vmatpush1.bf16.msra.mxu0 0
        %809 = vmatprep.subr.bf16.mxu0 0
        %810 = vmatpush1.bf16.msra.mxu0 0
        %811 = vmatprep.mubr.bf16.mxu0 0
        %812 = vmatmul.mubr.bf16.gmra.mrb[0].mxu0 %v777
        %v813 = vpop.f32.mrb[0].mxu0
        %v814 = vadd.f32 0.0, %v813
        %v815 = vpop.f32.mrb[0].mxu0
        %v816 = vpop.f32.mrb[0].mxu0
        %v817 = vpop.f32.mrb[0].mxu0
        %818 = vdwg.mxu0
        %v823 = vunpack.c.l.b16 %v735
        %v824 = vunpack.c.l.b16 %v736
        %v825 = vunpack.c.l.b16 %v737
        %v826 = vunpack.c.l.b16 %v738
        %v827 = vpack.c.b16 %v824, %v823
        %v828 = vpack.c.b16 %v826, %v825
        %831 = vmatprep.subr.bf16.mxu0 0
        %832 = vmatpush1.bf16.msra.mxu0 %v827
        %833 = vmatprep.subr.bf16.mxu0 0
        %834 = vmatpush1.bf16.msra.mxu0 %v828
        %835 = vmatprep.subr.bf16.mxu0 0
        %836 = vmatpush1.bf16.msra.mxu0 0
        %837 = vmatprep.subr.bf16.mxu0 0
        %838 = vmatpush1.bf16.msra.mxu0 0
        %839 = vmatprep.subr.bf16.mxu0 0
        %840 = vmatpush1.bf16.msra.mxu0 0
        %841 = vmatprep.subr.bf16.mxu0 0
        %842 = vmatpush1.bf16.msra.mxu0 0
        %843 = vmatprep.subr.bf16.mxu0 0
        %844 = vmatpush1.bf16.msra.mxu0 0
        %845 = vmatprep.subr.bf16.mxu0 0
        %846 = vmatpush1.bf16.msra.mxu0 0
        %847 = vmatprep.subr.bf16.mxu0 0
        %848 = vmatpush1.bf16.msra.mxu0 0
        %849 = vmatprep.subr.bf16.mxu0 0
        %850 = vmatpush1.bf16.msra.mxu0 0
        %851 = vmatprep.subr.bf16.mxu0 0
        %852 = vmatpush1.bf16.msra.mxu0 0
        %853 = vmatprep.subr.bf16.mxu0 0
        %854 = vmatpush1.bf16.msra.mxu0 0
        %855 = vmatprep.subr.bf16.mxu0 0
        %856 = vmatpush1.bf16.msra.mxu0 0
        %857 = vmatprep.subr.bf16.mxu0 0
        %858 = vmatpush1.bf16.msra.mxu0 0
        %859 = vmatprep.subr.bf16.mxu0 0
        %860 = vmatpush1.bf16.msra.mxu0 0
        %861 = vmatprep.subr.bf16.mxu0 0
        %862 = vmatpush1.bf16.msra.mxu0 0
        %863 = vmatprep.mubr.bf16.mxu0 0
        %864 = vmatmul.mubr.bf16.gmra.mrb[0].mxu0 %v777
        %v865 = vpop.f32.mrb[0].mxu0
        %v866 = vadd.f32 0.0, %v865
        %v867 = vpop.f32.mrb[0].mxu0
        %v868 = vpop.f32.mrb[0].mxu0
        %v869 = vpop.f32.mrb[0].mxu0
        %870 = vdwg.mxu0
        %v875 = vunpack.c.l.b16 %v739
        %v876 = vunpack.c.l.b16 %v740
        %v877 = vunpack.c.l.b16 %v741
        %v878 = vunpack.c.l.b16 %v742
        %v879 = vpack.c.b16 %v876, %v875
        %v880 = vpack.c.b16 %v878, %v877
        %883 = vmatprep.subr.bf16.mxu0 0
        %884 = vmatpush1.bf16.msra.mxu0 %v879
        %885 = vmatprep.subr.bf16.mxu0 0
        %886 = vmatpush1.bf16.msra.mxu0 %v880
        %887 = vmatprep.subr.bf16.mxu0 0
        %888 = vmatpush1.bf16.msra.mxu0 0
        %889 = vmatprep.subr.bf16.mxu0 0
        %890 = vmatpush1.bf16.msra.mxu0 0
        %891 = vmatprep.subr.bf16.mxu0 0
        %892 = vmatpush1.bf16.msra.mxu0 0
        %893 = vmatprep.subr.bf16.mxu0 0
        %894 = vmatpush1.bf16.msra.mxu0 0
        %895 = vmatprep.subr.bf16.mxu0 0
        %896 = vmatpush1.bf16.msra.mxu0 0
        %897 = vmatprep.subr.bf16.mxu0 0
        %898 = vmatpush1.bf16.msra.mxu0 0
        %899 = vmatprep.subr.bf16.mxu0 0
        %900 = vmatpush1.bf16.msra.mxu0 0
        %901 = vmatprep.subr.bf16.mxu0 0
        %902 = vmatpush1.bf16.msra.mxu0 0
        %903 = vmatprep.subr.bf16.mxu0 0
        %904 = vmatpush1.bf16.msra.mxu0 0
        %905 = vmatprep.subr.bf16.mxu0 0
        %906 = vmatpush1.bf16.msra.mxu0 0
        %907 = vmatprep.subr.bf16.mxu0 0
        %908 = vmatpush1.bf16.msra.mxu0 0
        %909 = vmatprep.subr.bf16.mxu0 0
        %910 = vmatpush1.bf16.msra.mxu0 0
        %911 = vmatprep.subr.bf16.mxu0 0
        %912 = vmatpush1.bf16.msra.mxu0 0
        %913 = vmatprep.subr.bf16.mxu0 0
        %914 = vmatpush1.bf16.msra.mxu0 0
        %915 = vmatprep.mubr.bf16.mxu0 0
        %916 = vmatmul.mubr.bf16.gmra.mrb[0].mxu0 %v777
        %v917 = vpop.f32.mrb[0].mxu0
        %v918 = vadd.f32 0.0, %v917
        %v919 = vpop.f32.mrb[0].mxu0
        %v920 = vpop.f32.mrb[0].mxu0
        %v921 = vpop.f32.mrb[0].mxu0
        %922 = vdwg.mxu0
        %v927 = vunpack.c.l.b16 %v743
        %v928 = vunpack.c.l.b16 %v744
        %v929 = vunpack.c.l.b16 %v745
        %v930 = vunpack.c.l.b16 %v746
        %v931 = vpack.c.b16 %v928, %v927
        %v932 = vpack.c.b16 %v930, %v929
        %935 = vmatprep.subr.bf16.mxu0 0
        %936 = vmatpush1.bf16.msra.mxu0 %v931
        %937 = vmatprep.subr.bf16.mxu0 0
        %938 = vmatpush1.bf16.msra.mxu0 %v932
        %939 = vmatprep.subr.bf16.mxu0 0
        %940 = vmatpush1.bf16.msra.mxu0 0
        %941 = vmatprep.subr.bf16.mxu0 0
        %942 = vmatpush1.bf16.msra.mxu0 0
        %943 = vmatprep.subr.bf16.mxu0 0
        %944 = vmatpush1.bf16.msra.mxu0 0
        %945 = vmatprep.subr.bf16.mxu0 0
        %946 = vmatpush1.bf16.msra.mxu0 0
        %947 = vmatprep.subr.bf16.mxu0 0
        %948 = vmatpush1.bf16.msra.mxu0 0
        %949 = vmatprep.subr.bf16.mxu0 0
        %950 = vmatpush1.bf16.msra.mxu0 0
        %951 = vmatprep.subr.bf16.mxu0 0
        %952 = vmatpush1.bf16.msra.mxu0 0
        %953 = vmatprep.subr.bf16.mxu0 0
        %954 = vmatpush1.bf16.msra.mxu0 0
        %955 = vmatprep.subr.bf16.mxu0 0
        %956 = vmatpush1.bf16.msra.mxu0 0
        %957 = vmatprep.subr.bf16.mxu0 0
        %958 = vmatpush1.bf16.msra.mxu0 0
        %959 = vmatprep.subr.bf16.mxu0 0
        %960 = vmatpush1.bf16.msra.mxu0 0
        %961 = vmatprep.subr.bf16.mxu0 0
        %962 = vmatpush1.bf16.msra.mxu0 0
        %963 = vmatprep.subr.bf16.mxu0 0
        %964 = vmatpush1.bf16.msra.mxu0 0
        %965 = vmatprep.subr.bf16.mxu0 0
        %966 = vmatpush1.bf16.msra.mxu0 0
        %967 = vmatprep.mubr.bf16.mxu0 0
        %968 = vmatmul.mubr.bf16.gmra.mrb[0].mxu0 %v777
        %v969 = vpop.f32.mrb[0].mxu0
        %v970 = vadd.f32 0.0, %v969
        %v971 = vpop.f32.mrb[0].mxu0
        %v972 = vpop.f32.mrb[0].mxu0
        %v973 = vpop.f32.mrb[0].mxu0
        %974 = vdwg.mxu0
        %v979 = vunpack.c.l.b16 %v747
        %v980 = vunpack.c.l.b16 %v748
        %v981 = vunpack.c.l.b16 %v749
        %v982 = vunpack.c.l.b16 %v750
        %v983 = vpack.c.b16 %v980, %v979
        %v984 = vpack.c.b16 %v982, %v981
        %987 = vmatprep.subr.bf16.mxu0 0
        %988 = vmatpush1.bf16.msra.mxu0 %v983
        %989 = vmatprep.subr.bf16.mxu0 0
        %990 = vmatpush1.bf16.msra.mxu0 %v984
        %991 = vmatprep.subr.bf16.mxu0 0
        %992 = vmatpush1.bf16.msra.mxu0 0
        %993 = vmatprep.subr.bf16.mxu0 0
        %994 = vmatpush1.bf16.msra.mxu0 0
        %995 = vmatprep.subr.bf16.mxu0 0
        %996 = vmatpush1.bf16.msra.mxu0 0
        %997 = vmatprep.subr.bf16.mxu0 0
        %998 = vmatpush1.bf16.msra.mxu0 0
        %999 = vmatprep.subr.bf16.mxu0 0
        %1000 = vmatpush1.bf16.msra.mxu0 0
        %1001 = vmatprep.subr.bf16.mxu0 0
        %1002 = vmatpush1.bf16.msra.mxu0 0
        %1003 = vmatprep.subr.bf16.mxu0 0
        %1004 = vmatpush1.bf16.msra.mxu0 0
        %1005 = vmatprep.subr.bf16.mxu0 0
        %1006 = vmatpush1.bf16.msra.mxu0 0
        %1007 = vmatprep.subr.bf16.mxu0 0
        %1008 = vmatpush1.bf16.msra.mxu0 0
        %1009 = vmatprep.subr.bf16.mxu0 0
        %1010 = vmatpush1.bf16.msra.mxu0 0
        %1011 = vmatprep.subr.bf16.mxu0 0
        %1012 = vmatpush1.bf16.msra.mxu0 0
        %1013 = vmatprep.subr.bf16.mxu0 0
        %1014 = vmatpush1.bf16.msra.mxu0 0
        %1015 = vmatprep.subr.bf16.mxu0 0
        %1016 = vmatpush1.bf16.msra.mxu0 0
        %1017 = vmatprep.subr.bf16.mxu0 0
        %1018 = vmatpush1.bf16.msra.mxu0 0
        %1019 = vmatprep.mubr.bf16.mxu0 0
        %1020 = vmatmul.mubr.bf16.gmra.mrb[0].mxu0 %v777
        %v1021 = vpop.f32.mrb[0].mxu0
        %v1022 = vadd.f32 0.0, %v1021
        %v1023 = vpop.f32.mrb[0].mxu0
        %v1024 = vpop.f32.mrb[0].mxu0
        %v1025 = vpop.f32.mrb[0].mxu0
        %1026 = vdwg.mxu0
        %v1031 = vunpack.c.l.b16 %v751
        %v1032 = vunpack.c.l.b16 %v752
        %v1033 = vunpack.c.l.b16 %v753
        %v1034 = vunpack.c.l.b16 %v754
        %v1035 = vpack.c.b16 %v1032, %v1031
        %v1036 = vpack.c.b16 %v1034, %v1033
        %1039 = vmatprep.subr.bf16.mxu0 0
        %1040 = vmatpush1.bf16.msra.mxu0 %v1035
        %1041 = vmatprep.subr.bf16.mxu0 0
        %1042 = vmatpush1.bf16.msra.mxu0 %v1036
        %1043 = vmatprep.subr.bf16.mxu0 0
        %1044 = vmatpush1.bf16.msra.mxu0 0
        %1045 = vmatprep.subr.bf16.mxu0 0
        %1046 = vmatpush1.bf16.msra.mxu0 0
        %1047 = vmatprep.subr.bf16.mxu0 0
        %1048 = vmatpush1.bf16.msra.mxu0 0
        %1049 = vmatprep.subr.bf16.mxu0 0
        %1050 = vmatpush1.bf16.msra.mxu0 0
        %1051 = vmatprep.subr.bf16.mxu0 0
        %1052 = vmatpush1.bf16.msra.mxu0 0
        %1053 = vmatprep.subr.bf16.mxu0 0
        %1054 = vmatpush1.bf16.msra.mxu0 0
        %1055 = vmatprep.subr.bf16.mxu0 0
        %1056 = vmatpush1.bf16.msra.mxu0 0
        %1057 = vmatprep.subr.bf16.mxu0 0
        %1058 = vmatpush1.bf16.msra.mxu0 0
        %1059 = vmatprep.subr.bf16.mxu0 0
        %1060 = vmatpush1.bf16.msra.mxu0 0
        %1061 = vmatprep.subr.bf16.mxu0 0
        %1062 = vmatpush1.bf16.msra.mxu0 0
        %1063 = vmatprep.subr.bf16.mxu0 0
        %1064 = vmatpush1.bf16.msra.mxu0 0
        %1065 = vmatprep.subr.bf16.mxu0 0
        %1066 = vmatpush1.bf16.msra.mxu0 0
        %1067 = vmatprep.subr.bf16.mxu0 0
        %1068 = vmatpush1.bf16.msra.mxu0 0
        %1069 = vmatprep.subr.bf16.mxu0 0
        %1070 = vmatpush1.bf16.msra.mxu0 0
        %1071 = vmatprep.mubr.bf16.mxu0 0
        %1072 = vmatmul.mubr.bf16.gmra.mrb[0].mxu0 %v777
        %v1073 = vpop.f32.mrb[0].mxu0
        %v1074 = vadd.f32 0.0, %v1073
        %v1075 = vpop.f32.mrb[0].mxu0
        %v1076 = vpop.f32.mrb[0].mxu0
        %v1077 = vpop.f32.mrb[0].mxu0
        %1078 = vdwg.mxu0
        %v1083 = vunpack.c.l.b16 %v755
        %v1084 = vunpack.c.l.b16 %v756
        %v1085 = vunpack.c.l.b16 %v757
        %v1086 = vunpack.c.l.b16 %v758
        %v1087 = vpack.c.b16 %v1084, %v1083
        %v1088 = vpack.c.b16 %v1086, %v1085
        %1091 = vmatprep.subr.bf16.mxu0 0
        %1092 = vmatpush1.bf16.msra.mxu0 %v1087
        %1093 = vmatprep.subr.bf16.mxu0 0
        %1094 = vmatpush1.bf16.msra.mxu0 %v1088
        %1095 = vmatprep.subr.bf16.mxu0 0
        %1096 = vmatpush1.bf16.msra.mxu0 0
        %1097 = vmatprep.subr.bf16.mxu0 0
        %1098 = vmatpush1.bf16.msra.mxu0 0
        %1099 = vmatprep.subr.bf16.mxu0 0
        %1100 = vmatpush1.bf16.msra.mxu0 0
        %1101 = vmatprep.subr.bf16.mxu0 0
        %1102 = vmatpush1.bf16.msra.mxu0 0
        %1103 = vmatprep.subr.bf16.mxu0 0
        %1104 = vmatpush1.bf16.msra.mxu0 0
        %1105 = vmatprep.subr.bf16.mxu0 0
        %1106 = vmatpush1.bf16.msra.mxu0 0
        %1107 = vmatprep.subr.bf16.mxu0 0
        %1108 = vmatpush1.bf16.msra.mxu0 0
        %1109 = vmatprep.subr.bf16.mxu0 0
        %1110 = vmatpush1.bf16.msra.mxu0 0
        %1111 = vmatprep.subr.bf16.mxu0 0
        %1112 = vmatpush1.bf16.msra.mxu0 0
        %1113 = vmatprep.subr.bf16.mxu0 0
        %1114 = vmatpush1.bf16.msra.mxu0 0
        %1115 = vmatprep.subr.bf16.mxu0 0
        %1116 = vmatpush1.bf16.msra.mxu0 0
        %1117 = vmatprep.subr.bf16.mxu0 0
        %1118 = vmatpush1.bf16.msra.mxu0 0
        %1119 = vmatprep.subr.bf16.mxu0 0
        %1120 = vmatpush1.bf16.msra.mxu0 0
        %1121 = vmatprep.subr.bf16.mxu0 0
        %1122 = vmatpush1.bf16.msra.mxu0 0
        %1123 = vmatprep.mubr.bf16.mxu0 0
        %1124 = vmatmul.mubr.bf16.gmra.mrb[0].mxu0 %v777
        %v1125 = vpop.f32.mrb[0].mxu0
        %v1126 = vadd.f32 0.0, %v1125
        %v1127 = vpop.f32.mrb[0].mxu0
        %v1128 = vpop.f32.mrb[0].mxu0
        %v1129 = vpop.f32.mrb[0].mxu0
        %1130 = vdwg.mxu0
        %v1135 = vunpack.c.l.b16 %v759
        %v1136 = vunpack.c.l.b16 %v760
        %v1137 = vunpack.c.l.b16 %v761
        %v1138 = vunpack.c.l.b16 %v762
        %v1139 = vpack.c.b16 %v1136, %v1135
        %v1140 = vpack.c.b16 %v1138, %v1137
        %1143 = vmatprep.subr.bf16.mxu0 0
        %1144 = vmatpush1.bf16.msra.mxu0 %v1139
        %1145 = vmatprep.subr.bf16.mxu0 0
        %1146 = vmatpush1.bf16.msra.mxu0 %v1140
        %1147 = vmatprep.subr.bf16.mxu0 0
        %1148 = vmatpush1.bf16.msra.mxu0 0
        %1149 = vmatprep.subr.bf16.mxu0 0
        %1150 = vmatpush1.bf16.msra.mxu0 0
        %1151 = vmatprep.subr.bf16.mxu0 0
        %1152 = vmatpush1.bf16.msra.mxu0 0
        %1153 = vmatprep.subr.bf16.mxu0 0
        %1154 = vmatpush1.bf16.msra.mxu0 0
        %1155 = vmatprep.subr.bf16.mxu0 0
        %1156 = vmatpush1.bf16.msra.mxu0 0
        %1157 = vmatprep.subr.bf16.mxu0 0
        %1158 = vmatpush1.bf16.msra.mxu0 0
        %1159 = vmatprep.subr.bf16.mxu0 0
        %1160 = vmatpush1.bf16.msra.mxu0 0
        %1161 = vmatprep.subr.bf16.mxu0 0
        %1162 = vmatpush1.bf16.msra.mxu0 0
        %1163 = vmatprep.subr.bf16.mxu0 0
        %1164 = vmatpush1.bf16.msra.mxu0 0
        %1165 = vmatprep.subr.bf16.mxu0 0
        %1166 = vmatpush1.bf16.msra.mxu0 0
        %1167 = vmatprep.subr.bf16.mxu0 0
        %1168 = vmatpush1.bf16.msra.mxu0 0
        %1169 = vmatprep.subr.bf16.mxu0 0
        %1170 = vmatpush1.bf16.msra.mxu0 0
        %1171 = vmatprep.subr.bf16.mxu0 0
        %1172 = vmatpush1.bf16.msra.mxu0 0
        %1173 = vmatprep.subr.bf16.mxu0 0
        %1174 = vmatpush1.bf16.msra.mxu0 0
        %1175 = vmatprep.mubr.bf16.mxu0 0
        %1176 = vmatmul.mubr.bf16.gmra.mrb[0].mxu0 %v777
        %v1177 = vpop.f32.mrb[0].mxu0
        %v1178 = vadd.f32 0.0, %v1177
        %v1179 = vpop.f32.mrb[0].mxu0
        %v1180 = vpop.f32.mrb[0].mxu0
        %v1181 = vpop.f32.mrb[0].mxu0
        %1182 = vdwg.mxu0
        %v1183 = vpack.c.bf16 %v814, %v814
        %v1184 = vpack.c.bf16 %v866, %v866
        %v1185 = vpack.c.bf16 %v918, %v918
        %v1186 = vpack.c.bf16 %v970, %v970
        %v1187 = vpack.c.bf16 %v1022, %v1022
        %v1188 = vpack.c.bf16 %v1074, %v1074
        %v1189 = vpack.c.bf16 %v1126, %v1126
        %v1190 = vpack.c.bf16 %v1178, %v1178
        %v1191 = vld [vmem:[#allocation2] sm:$0xf]
        %v1192 = vld [vmem:[#allocation2 + $0x4] sm:$0xf]
        %v1193 = vld [vmem:[#allocation2 + $0x8] sm:$0xf]
        %v1194 = vld [vmem:[#allocation2 + $0xc] sm:$0xf]
        %v1195 = vld [vmem:[#allocation2 + $0x10] sm:$0xf]
        %v1196 = vld [vmem:[#allocation2 + $0x14] sm:$0xf]
        %v1197 = vld [vmem:[#allocation2 + $0x18] sm:$0xf]
        %v1198 = vld [vmem:[#allocation2 + $0x1c] sm:$0xf]
        %s1199 = sadd.s32 0, 8
        %s1200 = smul.addr %s1199, 4
        %s1201 = scalar_lea.vmem [#allocation2], %s1200
        %v1202 = vld [vmem:[%s1201] sm:$0xf]
        %v1203 = vld [vmem:[%s1201 + $0x4] sm:$0xf]
        %v1204 = vld [vmem:[%s1201 + $0x8] sm:$0xf]
        %v1205 = vld [vmem:[%s1201 + $0xc] sm:$0xf]
        %v1206 = vld [vmem:[%s1201 + $0x10] sm:$0xf]
        %v1207 = vld [vmem:[%s1201 + $0x14] sm:$0xf]
        %v1208 = vld [vmem:[%s1201 + $0x18] sm:$0xf]
        %v1209 = vld [vmem:[%s1201 + $0x1c] sm:$0xf]
        %vm1210 = vcmask 31744
        %v1212 = vsel %vm1210, %v1183, 0
        %v1215 = vsel %vm1210, %v1191, 0
        %1217 = vmatprep.subr.bf16.mxu0 0
        %1218 = vmatpush1.bf16.xpose.msra.mxu0 %v1215
        %1219 = vmatprep.subr.bf16.mxu0 0
        %1220 = vmatpush1.bf16.xpose.msra.mxu0 0
        %1221 = vmatprep.subr.bf16.mxu0 0
        %1222 = vmatpush1.bf16.xpose.msra.mxu0 0
        %1223 = vmatprep.subr.bf16.mxu0 0
        %1224 = vmatpush1.bf16.xpose.msra.mxu0 0
        %1225 = vmatprep.subr.bf16.mxu0 0
        %1226 = vmatpush1.bf16.xpose.msra.mxu0 0
        %1227 = vmatprep.subr.bf16.mxu0 0
        %1228 = vmatpush1.bf16.xpose.msra.mxu0 0
        %1229 = vmatprep.subr.bf16.mxu0 0
        %1230 = vmatpush1.bf16.xpose.msra.mxu0 0
        %1231 = vmatprep.subr.bf16.mxu0 0
        %1232 = vmatpush1.bf16.xpose.msra.mxu0 0
        %1233 = vmatprep.subr.bf16.mxu0 0
        %1234 = vmatpush1.bf16.xpose.msra.mxu0 0
        %1235 = vmatprep.subr.bf16.mxu0 0
        %1236 = vmatpush1.bf16.xpose.msra.mxu0 0
        %1237 = vmatprep.subr.bf16.mxu0 0
        %1238 = vmatpush1.bf16.xpose.msra.mxu0 0
        %1239 = vmatprep.subr.bf16.mxu0 0
        %1240 = vmatpush1.bf16.xpose.msra.mxu0 0
        %1241 = vmatprep.subr.bf16.mxu0 0
        %1242 = vmatpush1.bf16.xpose.msra.mxu0 0
        %1243 = vmatprep.subr.bf16.mxu0 0
        %1244 = vmatpush1.bf16.xpose.msra.mxu0 0
        %1245 = vmatprep.subr.bf16.mxu0 0
        %1246 = vmatpush1.bf16.xpose.msra.mxu0 0
        %1247 = vmatprep.subr.bf16.mxu0 0
        %1248 = vmatpush1.bf16.xpose.msra.mxu0 0
        %1249 = vmatprep.mubr.bf16.mxu0 0
        %1250 = vmatmul.mubr.bf16.gmra.mrb[0].mxu0 %v1212
        %v1251 = vpop.f32.mrb[0].mxu0
        %v1252 = vadd.f32 0.0, %v1251
        %v1253 = vpop.f32.mrb[0].mxu0
        %v1254 = vpop.f32.mrb[0].mxu0
        %v1255 = vpop.f32.mrb[0].mxu0
        %1256 = vdwg.mxu0
        %v1258 = vsel %vm1210, %v1184, 0
        %v1261 = vsel %vm1210, %v1192, 0
        %1263 = vmatprep.subr.bf16.mxu0 0
        %1264 = vmatpush1.bf16.xpose.msra.mxu0 %v1261
        %1265 = vmatprep.subr.bf16.mxu0 0
        %1266 = vmatpush1.bf16.xpose.msra.mxu0 0
        %1267 = vmatprep.subr.bf16.mxu0 0
        %1268 = vmatpush1.bf16.xpose.msra.mxu0 0
        %1269 = vmatprep.subr.bf16.mxu0 0
        %1270 = vmatpush1.bf16.xpose.msra.mxu0 0
        %1271 = vmatprep.subr.bf16.mxu0 0
        %1272 = vmatpush1.bf16.xpose.msra.mxu0 0
        %1273 = vmatprep.subr.bf16.mxu0 0
        %1274 = vmatpush1.bf16.xpose.msra.mxu0 0
        %1275 = vmatprep.subr.bf16.mxu0 0
        %1276 = vmatpush1.bf16.xpose.msra.mxu0 0
        %1277 = vmatprep.subr.bf16.mxu0 0
        %1278 = vmatpush1.bf16.xpose.msra.mxu0 0
        %1279 = vmatprep.subr.bf16.mxu0 0
        %1280 = vmatpush1.bf16.xpose.msra.mxu0 0
        %1281 = vmatprep.subr.bf16.mxu0 0
        %1282 = vmatpush1.bf16.xpose.msra.mxu0 0
        %1283 = vmatprep.subr.bf16.mxu0 0
        %1284 = vmatpush1.bf16.xpose.msra.mxu0 0
        %1285 = vmatprep.subr.bf16.mxu0 0
        %1286 = vmatpush1.bf16.xpose.msra.mxu0 0
        %1287 = vmatprep.subr.bf16.mxu0 0
        %1288 = vmatpush1.bf16.xpose.msra.mxu0 0
        %1289 = vmatprep.subr.bf16.mxu0 0
        %1290 = vmatpush1.bf16.xpose.msra.mxu0 0
        %1291 = vmatprep.subr.bf16.mxu0 0
        %1292 = vmatpush1.bf16.xpose.msra.mxu0 0
        %1293 = vmatprep.subr.bf16.mxu0 0
        %1294 = vmatpush1.bf16.xpose.msra.mxu0 0
        %1295 = vmatprep.mubr.bf16.mxu0 0
        %1296 = vmatmul.mubr.bf16.gmra.mrb[0].mxu0 %v1258
        %v1297 = vpop.f32.mrb[0].mxu0
        %v1298 = vadd.f32 0.0, %v1297
        %v1299 = vpop.f32.mrb[0].mxu0
        %v1300 = vpop.f32.mrb[0].mxu0
        %v1301 = vpop.f32.mrb[0].mxu0
        %1302 = vdwg.mxu0
        %v1304 = vsel %vm1210, %v1185, 0
        %v1307 = vsel %vm1210, %v1193, 0
        %1309 = vmatprep.subr.bf16.mxu0 0
        %1310 = vmatpush1.bf16.xpose.msra.mxu0 %v1307
        %1311 = vmatprep.subr.bf16.mxu0 0
        %1312 = vmatpush1.bf16.xpose.msra.mxu0 0
        %1313 = vmatprep.subr.bf16.mxu0 0
        %1314 = vmatpush1.bf16.xpose.msra.mxu0 0
        %1315 = vmatprep.subr.bf16.mxu0 0
        %1316 = vmatpush1.bf16.xpose.msra.mxu0 0
        %1317 = vmatprep.subr.bf16.mxu0 0
        %1318 = vmatpush1.bf16.xpose.msra.mxu0 0
        %1319 = vmatprep.subr.bf16.mxu0 0
        %1320 = vmatpush1.bf16.xpose.msra.mxu0 0
        %1321 = vmatprep.subr.bf16.mxu0 0
        %1322 = vmatpush1.bf16.xpose.msra.mxu0 0
        %1323 = vmatprep.subr.bf16.mxu0 0
        %1324 = vmatpush1.bf16.xpose.msra.mxu0 0
        %1325 = vmatprep.subr.bf16.mxu0 0
        %1326 = vmatpush1.bf16.xpose.msra.mxu0 0
        %1327 = vmatprep.subr.bf16.mxu0 0
        %1328 = vmatpush1.bf16.xpose.msra.mxu0 0
        %1329 = vmatprep.subr.bf16.mxu0 0
        %1330 = vmatpush1.bf16.xpose.msra.mxu0 0
        %1331 = vmatprep.subr.bf16.mxu0 0
        %1332 = vmatpush1.bf16.xpose.msra.mxu0 0
        %1333 = vmatprep.subr.bf16.mxu0 0
        %1334 = vmatpush1.bf16.xpose.msra.mxu0 0
        %1335 = vmatprep.subr.bf16.mxu0 0
        %1336 = vmatpush1.bf16.xpose.msra.mxu0 0
        %1337 = vmatprep.subr.bf16.mxu0 0
        %1338 = vmatpush1.bf16.xpose.msra.mxu0 0
        %1339 = vmatprep.subr.bf16.mxu0 0
        %1340 = vmatpush1.bf16.xpose.msra.mxu0 0
        %1341 = vmatprep.mubr.bf16.mxu0 0
        %1342 = vmatmul.mubr.bf16.gmra.mrb[0].mxu0 %v1304
        %v1343 = vpop.f32.mrb[0].mxu0
        %v1344 = vadd.f32 0.0, %v1343
        %v1345 = vpop.f32.mrb[0].mxu0
        %v1346 = vpop.f32.mrb[0].mxu0
        %v1347 = vpop.f32.mrb[0].mxu0
        %1348 = vdwg.mxu0
        %v1350 = vsel %vm1210, %v1186, 0
        %v1353 = vsel %vm1210, %v1194, 0
        %1355 = vmatprep.subr.bf16.mxu0 0
        %1356 = vmatpush1.bf16.xpose.msra.mxu0 %v1353
        %1357 = vmatprep.subr.bf16.mxu0 0
        %1358 = vmatpush1.bf16.xpose.msra.mxu0 0
        %1359 = vmatprep.subr.bf16.mxu0 0
        %1360 = vmatpush1.bf16.xpose.msra.mxu0 0
        %1361 = vmatprep.subr.bf16.mxu0 0
        %1362 = vmatpush1.bf16.xpose.msra.mxu0 0
        %1363 = vmatprep.subr.bf16.mxu0 0
        %1364 = vmatpush1.bf16.xpose.msra.mxu0 0
        %1365 = vmatprep.subr.bf16.mxu0 0
        %1366 = vmatpush1.bf16.xpose.msra.mxu0 0
        %1367 = vmatprep.subr.bf16.mxu0 0
        %1368 = vmatpush1.bf16.xpose.msra.mxu0 0
        %1369 = vmatprep.subr.bf16.mxu0 0
        %1370 = vmatpush1.bf16.xpose.msra.mxu0 0
        %1371 = vmatprep.subr.bf16.mxu0 0
        %1372 = vmatpush1.bf16.xpose.msra.mxu0 0
        %1373 = vmatprep.subr.bf16.mxu0 0
        %1374 = vmatpush1.bf16.xpose.msra.mxu0 0
        %1375 = vmatprep.subr.bf16.mxu0 0
        %1376 = vmatpush1.bf16.xpose.msra.mxu0 0
        %1377 = vmatprep.subr.bf16.mxu0 0
        %1378 = vmatpush1.bf16.xpose.msra.mxu0 0
        %1379 = vmatprep.subr.bf16.mxu0 0
        %1380 = vmatpush1.bf16.xpose.msra.mxu0 0
        %1381 = vmatprep.subr.bf16.mxu0 0
        %1382 = vmatpush1.bf16.xpose.msra.mxu0 0
        %1383 = vmatprep.subr.bf16.mxu0 0
        %1384 = vmatpush1.bf16.xpose.msra.mxu0 0
        %1385 = vmatprep.subr.bf16.mxu0 0
        %1386 = vmatpush1.bf16.xpose.msra.mxu0 0
        %1387 = vmatprep.mubr.bf16.mxu0 0
        %1388 = vmatmul.mubr.bf16.gmra.mrb[0].mxu0 %v1350
        %v1389 = vpop.f32.mrb[0].mxu0
        %v1390 = vadd.f32 0.0, %v1389
        %v1391 = vpop.f32.mrb[0].mxu0
        %v1392 = vpop.f32.mrb[0].mxu0
        %v1393 = vpop.f32.mrb[0].mxu0
        %1394 = vdwg.mxu0
        %v1396 = vsel %vm1210, %v1187, 0
        %v1399 = vsel %vm1210, %v1195, 0
        %1401 = vmatprep.subr.bf16.mxu0 0
        %1402 = vmatpush1.bf16.xpose.msra.mxu0 %v1399
        %1403 = vmatprep.subr.bf16.mxu0 0
        %1404 = vmatpush1.bf16.xpose.msra.mxu0 0
        %1405 = vmatprep.subr.bf16.mxu0 0
        %1406 = vmatpush1.bf16.xpose.msra.mxu0 0
        %1407 = vmatprep.subr.bf16.mxu0 0
        %1408 = vmatpush1.bf16.xpose.msra.mxu0 0
        %1409 = vmatprep.subr.bf16.mxu0 0
        %1410 = vmatpush1.bf16.xpose.msra.mxu0 0
        %1411 = vmatprep.subr.bf16.mxu0 0
        %1412 = vmatpush1.bf16.xpose.msra.mxu0 0
        %1413 = vmatprep.subr.bf16.mxu0 0
        %1414 = vmatpush1.bf16.xpose.msra.mxu0 0
        %1415 = vmatprep.subr.bf16.mxu0 0
        %1416 = vmatpush1.bf16.xpose.msra.mxu0 0
        %1417 = vmatprep.subr.bf16.mxu0 0
        %1418 = vmatpush1.bf16.xpose.msra.mxu0 0
        %1419 = vmatprep.subr.bf16.mxu0 0
        %1420 = vmatpush1.bf16.xpose.msra.mxu0 0
        %1421 = vmatprep.subr.bf16.mxu0 0
        %1422 = vmatpush1.bf16.xpose.msra.mxu0 0
        %1423 = vmatprep.subr.bf16.mxu0 0
        %1424 = vmatpush1.bf16.xpose.msra.mxu0 0
        %1425 = vmatprep.subr.bf16.mxu0 0
        %1426 = vmatpush1.bf16.xpose.msra.mxu0 0
        %1427 = vmatprep.subr.bf16.mxu0 0
        %1428 = vmatpush1.bf16.xpose.msra.mxu0 0
        %1429 = vmatprep.subr.bf16.mxu0 0
        %1430 = vmatpush1.bf16.xpose.msra.mxu0 0
        %1431 = vmatprep.subr.bf16.mxu0 0
        %1432 = vmatpush1.bf16.xpose.msra.mxu0 0
        %1433 = vmatprep.mubr.bf16.mxu0 0
        %1434 = vmatmul.mubr.bf16.gmra.mrb[0].mxu0 %v1396
        %v1435 = vpop.f32.mrb[0].mxu0
        %v1436 = vadd.f32 0.0, %v1435
        %v1437 = vpop.f32.mrb[0].mxu0
        %v1438 = vpop.f32.mrb[0].mxu0
        %v1439 = vpop.f32.mrb[0].mxu0
        %1440 = vdwg.mxu0
        %v1442 = vsel %vm1210, %v1188, 0
        %v1445 = vsel %vm1210, %v1196, 0
        %1447 = vmatprep.subr.bf16.mxu0 0
        %1448 = vmatpush1.bf16.xpose.msra.mxu0 %v1445
        %1449 = vmatprep.subr.bf16.mxu0 0
        %1450 = vmatpush1.bf16.xpose.msra.mxu0 0
        %1451 = vmatprep.subr.bf16.mxu0 0
        %1452 = vmatpush1.bf16.xpose.msra.mxu0 0
        %1453 = vmatprep.subr.bf16.mxu0 0
        %1454 = vmatpush1.bf16.xpose.msra.mxu0 0
        %1455 = vmatprep.subr.bf16.mxu0 0
        %1456 = vmatpush1.bf16.xpose.msra.mxu0 0
        %1457 = vmatprep.subr.bf16.mxu0 0
        %1458 = vmatpush1.bf16.xpose.msra.mxu0 0
        %1459 = vmatprep.subr.bf16.mxu0 0
        %1460 = vmatpush1.bf16.xpose.msra.mxu0 0
        %1461 = vmatprep.subr.bf16.mxu0 0
        %1462 = vmatpush1.bf16.xpose.msra.mxu0 0
        %1463 = vmatprep.subr.bf16.mxu0 0
        %1464 = vmatpush1.bf16.xpose.msra.mxu0 0
        %1465 = vmatprep.subr.bf16.mxu0 0
        %1466 = vmatpush1.bf16.xpose.msra.mxu0 0
        %1467 = vmatprep.subr.bf16.mxu0 0
        %1468 = vmatpush1.bf16.xpose.msra.mxu0 0
        %1469 = vmatprep.subr.bf16.mxu0 0
        %1470 = vmatpush1.bf16.xpose.msra.mxu0 0
        %1471 = vmatprep.subr.bf16.mxu0 0
        %1472 = vmatpush1.bf16.xpose.msra.mxu0 0
        %1473 = vmatprep.subr.bf16.mxu0 0
        %1474 = vmatpush1.bf16.xpose.msra.mxu0 0
        %1475 = vmatprep.subr.bf16.mxu0 0
        %1476 = vmatpush1.bf16.xpose.msra.mxu0 0
        %1477 = vmatprep.subr.bf16.mxu0 0
        %1478 = vmatpush1.bf16.xpose.msra.mxu0 0
        %1479 = vmatprep.mubr.bf16.mxu0 0
        %1480 = vmatmul.mubr.bf16.gmra.mrb[0].mxu0 %v1442
        %v1481 = vpop.f32.mrb[0].mxu0
        %v1482 = vadd.f32 0.0, %v1481
        %v1483 = vpop.f32.mrb[0].mxu0
        %v1484 = vpop.f32.mrb[0].mxu0
        %v1485 = vpop.f32.mrb[0].mxu0
        %1486 = vdwg.mxu0
        %v1488 = vsel %vm1210, %v1189, 0
        %v1491 = vsel %vm1210, %v1197, 0
        %1493 = vmatprep.subr.bf16.mxu0 0
        %1494 = vmatpush1.bf16.xpose.msra.mxu0 %v1491
        %1495 = vmatprep.subr.bf16.mxu0 0
        %1496 = vmatpush1.bf16.xpose.msra.mxu0 0
        %1497 = vmatprep.subr.bf16.mxu0 0
        %1498 = vmatpush1.bf16.xpose.msra.mxu0 0
        %1499 = vmatprep.subr.bf16.mxu0 0
        %1500 = vmatpush1.bf16.xpose.msra.mxu0 0
        %1501 = vmatprep.subr.bf16.mxu0 0
        %1502 = vmatpush1.bf16.xpose.msra.mxu0 0
        %1503 = vmatprep.subr.bf16.mxu0 0
        %1504 = vmatpush1.bf16.xpose.msra.mxu0 0
        %1505 = vmatprep.subr.bf16.mxu0 0
        %1506 = vmatpush1.bf16.xpose.msra.mxu0 0
        %1507 = vmatprep.subr.bf16.mxu0 0
        %1508 = vmatpush1.bf16.xpose.msra.mxu0 0
        %1509 = vmatprep.subr.bf16.mxu0 0
        %1510 = vmatpush1.bf16.xpose.msra.mxu0 0
        %1511 = vmatprep.subr.bf16.mxu0 0
        %1512 = vmatpush1.bf16.xpose.msra.mxu0 0
        %1513 = vmatprep.subr.bf16.mxu0 0
        %1514 = vmatpush1.bf16.xpose.msra.mxu0 0
        %1515 = vmatprep.subr.bf16.mxu0 0
        %1516 = vmatpush1.bf16.xpose.msra.mxu0 0
        %1517 = vmatprep.subr.bf16.mxu0 0
        %1518 = vmatpush1.bf16.xpose.msra.mxu0 0
        %1519 = vmatprep.subr.bf16.mxu0 0
        %1520 = vmatpush1.bf16.xpose.msra.mxu0 0
        %1521 = vmatprep.subr.bf16.mxu0 0
        %1522 = vmatpush1.bf16.xpose.msra.mxu0 0
        %1523 = vmatprep.subr.bf16.mxu0 0
        %1524 = vmatpush1.bf16.xpose.msra.mxu0 0
        %1525 = vmatprep.mubr.bf16.mxu0 0
        %1526 = vmatmul.mubr.bf16.gmra.mrb[0].mxu0 %v1488
        %v1527 = vpop.f32.mrb[0].mxu0
        %v1528 = vadd.f32 0.0, %v1527
        %v1529 = vpop.f32.mrb[0].mxu0
        %v1530 = vpop.f32.mrb[0].mxu0
        %v1531 = vpop.f32.mrb[0].mxu0
        %1532 = vdwg.mxu0
        %v1534 = vsel %vm1210, %v1190, 0
        %v1537 = vsel %vm1210, %v1198, 0
        %1539 = vmatprep.subr.bf16.mxu0 0
        %1540 = vmatpush1.bf16.xpose.msra.mxu0 %v1537
        %1541 = vmatprep.subr.bf16.mxu0 0
        %1542 = vmatpush1.bf16.xpose.msra.mxu0 0
        %1543 = vmatprep.subr.bf16.mxu0 0
        %1544 = vmatpush1.bf16.xpose.msra.mxu0 0
        %1545 = vmatprep.subr.bf16.mxu0 0
        %1546 = vmatpush1.bf16.xpose.msra.mxu0 0
        %1547 = vmatprep.subr.bf16.mxu0 0
        %1548 = vmatpush1.bf16.xpose.msra.mxu0 0
        %1549 = vmatprep.subr.bf16.mxu0 0
        %1550 = vmatpush1.bf16.xpose.msra.mxu0 0
        %1551 = vmatprep.subr.bf16.mxu0 0
        %1552 = vmatpush1.bf16.xpose.msra.mxu0 0
        %1553 = vmatprep.subr.bf16.mxu0 0
        %1554 = vmatpush1.bf16.xpose.msra.mxu0 0
        %1555 = vmatprep.subr.bf16.mxu0 0
        %1556 = vmatpush1.bf16.xpose.msra.mxu0 0
        %1557 = vmatprep.subr.bf16.mxu0 0
        %1558 = vmatpush1.bf16.xpose.msra.mxu0 0
        %1559 = vmatprep.subr.bf16.mxu0 0
        %1560 = vmatpush1.bf16.xpose.msra.mxu0 0
        %1561 = vmatprep.subr.bf16.mxu0 0
        %1562 = vmatpush1.bf16.xpose.msra.mxu0 0
        %1563 = vmatprep.subr.bf16.mxu0 0
        %1564 = vmatpush1.bf16.xpose.msra.mxu0 0
        %1565 = vmatprep.subr.bf16.mxu0 0
        %1566 = vmatpush1.bf16.xpose.msra.mxu0 0
        %1567 = vmatprep.subr.bf16.mxu0 0
        %1568 = vmatpush1.bf16.xpose.msra.mxu0 0
        %1569 = vmatprep.subr.bf16.mxu0 0
        %1570 = vmatpush1.bf16.xpose.msra.mxu0 0
        %1571 = vmatprep.mubr.bf16.mxu0 0
        %1572 = vmatmul.mubr.bf16.gmra.mrb[0].mxu0 %v1534
        %v1573 = vpop.f32.mrb[0].mxu0
        %v1574 = vadd.f32 0.0, %v1573
        %v1575 = vpop.f32.mrb[0].mxu0
        %v1576 = vpop.f32.mrb[0].mxu0
        %v1577 = vpop.f32.mrb[0].mxu0
        %1578 = vdwg.mxu0
        %vm1579 = vcmask 64512
        %v1580 = vsel %vm1579, %v1252, -inf
        %1581 = vmax.xlane.f32.xlu0 %v1580
        %v1582 = vpop.xlane.xlu0 %1581
        %v1583 = vsel %vm1579, %v1298, -inf
        %1584 = vmax.xlane.f32.xlu0 %v1583
        %v1585 = vpop.xlane.xlu0 %1584
        %v1586 = vsel %vm1579, %v1344, -inf
        %1587 = vmax.xlane.f32.xlu0 %v1586
        %v1588 = vpop.xlane.xlu0 %1587
        %v1589 = vsel %vm1579, %v1390, -inf
        %1590 = vmax.xlane.f32.xlu0 %v1589
        %v1591 = vpop.xlane.xlu0 %1590
        %v1592 = vsel %vm1579, %v1436, -inf
        %1593 = vmax.xlane.f32.xlu0 %v1592
        %v1594 = vpop.xlane.xlu0 %1593
        %v1595 = vsel %vm1579, %v1482, -inf
        %1596 = vmax.xlane.f32.xlu0 %v1595
        %v1597 = vpop.xlane.xlu0 %1596
        %v1598 = vsel %vm1579, %v1528, -inf
        %1599 = vmax.xlane.f32.xlu0 %v1598
        %v1600 = vpop.xlane.xlu0 %1599
        %v1601 = vsel %vm1579, %v1574, -inf
        %1602 = vmax.xlane.f32.xlu0 %v1601
        %v1603 = vpop.xlane.xlu0 %1602
        %v1604 = vsub.f32 %v1252, %v1582
        %v1605 = vsub.f32 %v1298, %v1585
        %v1606 = vsub.f32 %v1344, %v1588
        %v1607 = vsub.f32 %v1390, %v1591
        %v1608 = vsub.f32 %v1436, %v1594
        %v1609 = vsub.f32 %v1482, %v1597
        %v1610 = vsub.f32 %v1528, %v1600
        %v1611 = vsub.f32 %v1574, %v1603
        %v1612 = vmul.f32 %v1604, 1.442695
        %v1613 = vpow.pop %v1612
        %v1614 = vmul.f32 %v1605, 1.442695
        %v1615 = vpow.pop %v1614
        %v1616 = vmul.f32 %v1606, 1.442695
        %v1617 = vpow.pop %v1616
        %v1618 = vmul.f32 %v1607, 1.442695
        %v1619 = vpow.pop %v1618
        %v1620 = vmul.f32 %v1608, 1.442695
        %v1621 = vpow.pop %v1620
        %v1622 = vmul.f32 %v1609, 1.442695
        %v1623 = vpow.pop %v1622
        %v1624 = vmul.f32 %v1610, 1.442695
        %v1625 = vpow.pop %v1624
        %v1626 = vmul.f32 %v1611, 1.442695
        %v1627 = vpow.pop %v1626
        %v1628 = vsel %vm1579, %v1613, 0.0
        %1629 = vadd.xlane.f32.xlu0 %v1628
        %v1630 = vpop.xlane.xlu0 %1629
        %v1631 = vsel %vm1579, %v1615, 0.0
        %1632 = vadd.xlane.f32.xlu0 %v1631
        %v1633 = vpop.xlane.xlu0 %1632
        %v1634 = vsel %vm1579, %v1617, 0.0
        %1635 = vadd.xlane.f32.xlu0 %v1634
        %v1636 = vpop.xlane.xlu0 %1635
        %v1637 = vsel %vm1579, %v1619, 0.0
        %1638 = vadd.xlane.f32.xlu0 %v1637
        %v1639 = vpop.xlane.xlu0 %1638
        %v1640 = vsel %vm1579, %v1621, 0.0
        %1641 = vadd.xlane.f32.xlu0 %v1640
        %v1642 = vpop.xlane.xlu0 %1641
        %v1643 = vsel %vm1579, %v1623, 0.0
        %1644 = vadd.xlane.f32.xlu0 %v1643
        %v1645 = vpop.xlane.xlu0 %1644
        %v1646 = vsel %vm1579, %v1625, 0.0
        %1647 = vadd.xlane.f32.xlu0 %v1646
        %v1648 = vpop.xlane.xlu0 %1647
        %v1649 = vsel %vm1579, %v1627, 0.0
        %1650 = vadd.xlane.f32.xlu0 %v1649
        %v1651 = vpop.xlane.xlu0 %1650
        %v1652 = vrcp.pop %v1630
        %v1653 = vmul.f32 1.0, %v1652
        %v1654 = vrcp.pop %v1633
        %v1655 = vmul.f32 1.0, %v1654
        %v1656 = vrcp.pop %v1636
        %v1657 = vmul.f32 1.0, %v1656
        %v1658 = vrcp.pop %v1639
        %v1659 = vmul.f32 1.0, %v1658
        %v1660 = vrcp.pop %v1642
        %v1661 = vmul.f32 1.0, %v1660
        %v1662 = vrcp.pop %v1645
        %v1663 = vmul.f32 1.0, %v1662
        %v1664 = vrcp.pop %v1648
        %v1665 = vmul.f32 1.0, %v1664
        %v1666 = vrcp.pop %v1651
        %v1667 = vmul.f32 1.0, %v1666
        %v1668 = vmul.f32 %v1613, %v1653
        %v1669 = vmul.f32 %v1615, %v1655
        %v1670 = vmul.f32 %v1617, %v1657
        %v1671 = vmul.f32 %v1619, %v1659
        %v1672 = vmul.f32 %v1621, %v1661
        %v1673 = vmul.f32 %v1623, %v1663
        %v1674 = vmul.f32 %v1625, %v1665
        %v1675 = vmul.f32 %v1627, %v1667
        %v1676 = vpack.c.bf16 %v1668, %v1668
        %v1677 = vpack.c.bf16 %v1669, %v1669
        %v1678 = vpack.c.bf16 %v1670, %v1670
        %v1679 = vpack.c.bf16 %v1671, %v1671
        %v1680 = vpack.c.bf16 %v1672, %v1672
        %v1681 = vpack.c.bf16 %v1673, %v1673
        %v1682 = vpack.c.bf16 %v1674, %v1674
        %v1683 = vpack.c.bf16 %v1675, %v1675
        %v1685 = vsel %vm1579, %v1676, 0
        %vm1687 = vcmask 1043456
        %v1689 = vsel %vm1687, %v1202, 0
        %1691 = vmatprep.subr.bf16.mxu0 0
        %1692 = vmatpush1.bf16.msra.mxu0 %v1689
        %1693 = vmatprep.subr.bf16.mxu0 0
        %1694 = vmatpush1.bf16.msra.mxu0 0
        %1695 = vmatprep.subr.bf16.mxu0 0
        %1696 = vmatpush1.bf16.msra.mxu0 0
        %1697 = vmatprep.subr.bf16.mxu0 0
        %1698 = vmatpush1.bf16.msra.mxu0 0
        %1699 = vmatprep.subr.bf16.mxu0 0
        %1700 = vmatpush1.bf16.msra.mxu0 0
        %1701 = vmatprep.subr.bf16.mxu0 0
        %1702 = vmatpush1.bf16.msra.mxu0 0
        %1703 = vmatprep.subr.bf16.mxu0 0
        %1704 = vmatpush1.bf16.msra.mxu0 0
        %1705 = vmatprep.subr.bf16.mxu0 0
        %1706 = vmatpush1.bf16.msra.mxu0 0
        %1707 = vmatprep.subr.bf16.mxu0 0
        %1708 = vmatpush1.bf16.msra.mxu0 0
        %1709 = vmatprep.subr.bf16.mxu0 0
        %1710 = vmatpush1.bf16.msra.mxu0 0
        %1711 = vmatprep.subr.bf16.mxu0 0
        %1712 = vmatpush1.bf16.msra.mxu0 0
        %1713 = vmatprep.subr.bf16.mxu0 0
        %1714 = vmatpush1.bf16.msra.mxu0 0
        %1715 = vmatprep.subr.bf16.mxu0 0
        %1716 = vmatpush1.bf16.msra.mxu0 0
        %1717 = vmatprep.subr.bf16.mxu0 0
        %1718 = vmatpush1.bf16.msra.mxu0 0
        %1719 = vmatprep.subr.bf16.mxu0 0
        %1720 = vmatpush1.bf16.msra.mxu0 0
        %1721 = vmatprep.subr.bf16.mxu0 0
        %1722 = vmatpush1.bf16.msra.mxu0 0
        %1723 = vmatprep.mubr.bf16.mxu0 0
        %1724 = vmatmul.mubr.bf16.gmra.mrb[0].mxu0 %v1685
        %v1725 = vpop.f32.mrb[0].mxu0
        %v1726 = vadd.f32 0.0, %v1725
        %v1727 = vpop.f32.mrb[0].mxu0
        %v1728 = vpop.f32.mrb[0].mxu0
        %v1729 = vpop.f32.mrb[0].mxu0
        %1730 = vdwg.mxu0
        %v1732 = vsel %vm1579, %v1677, 0
        %v1735 = vsel %vm1687, %v1203, 0
        %1737 = vmatprep.subr.bf16.mxu0 0
        %1738 = vmatpush1.bf16.msra.mxu0 %v1735
        %1739 = vmatprep.subr.bf16.mxu0 0
        %1740 = vmatpush1.bf16.msra.mxu0 0
        %1741 = vmatprep.subr.bf16.mxu0 0
        %1742 = vmatpush1.bf16.msra.mxu0 0
        %1743 = vmatprep.subr.bf16.mxu0 0
        %1744 = vmatpush1.bf16.msra.mxu0 0
        %1745 = vmatprep.subr.bf16.mxu0 0
        %1746 = vmatpush1.bf16.msra.mxu0 0
        %1747 = vmatprep.subr.bf16.mxu0 0
        %1748 = vmatpush1.bf16.msra.mxu0 0
        %1749 = vmatprep.subr.bf16.mxu0 0
        %1750 = vmatpush1.bf16.msra.mxu0 0
        %1751 = vmatprep.subr.bf16.mxu0 0
        %1752 = vmatpush1.bf16.msra.mxu0 0
        %1753 = vmatprep.subr.bf16.mxu0 0
        %1754 = vmatpush1.bf16.msra.mxu0 0
        %1755 = vmatprep.subr.bf16.mxu0 0
        %1756 = vmatpush1.bf16.msra.mxu0 0
        %1757 = vmatprep.subr.bf16.mxu0 0
        %1758 = vmatpush1.bf16.msra.mxu0 0
        %1759 = vmatprep.subr.bf16.mxu0 0
        %1760 = vmatpush1.bf16.msra.mxu0 0
        %1761 = vmatprep.subr.bf16.mxu0 0
        %1762 = vmatpush1.bf16.msra.mxu0 0
        %1763 = vmatprep.subr.bf16.mxu0 0
        %1764 = vmatpush1.bf16.msra.mxu0 0
        %1765 = vmatprep.subr.bf16.mxu0 0
        %1766 = vmatpush1.bf16.msra.mxu0 0
        %1767 = vmatprep.subr.bf16.mxu0 0
        %1768 = vmatpush1.bf16.msra.mxu0 0
        %1769 = vmatprep.mubr.bf16.mxu0 0
        %1770 = vmatmul.mubr.bf16.gmra.mrb[0].mxu0 %v1732
        %v1771 = vpop.f32.mrb[0].mxu0
        %v1772 = vadd.f32 0.0, %v1771
        %v1773 = vpop.f32.mrb[0].mxu0
        %v1774 = vpop.f32.mrb[0].mxu0
        %v1775 = vpop.f32.mrb[0].mxu0
        %1776 = vdwg.mxu0
        %v1778 = vsel %vm1579, %v1678, 0
        %v1781 = vsel %vm1687, %v1204, 0
        %1783 = vmatprep.subr.bf16.mxu0 0
        %1784 = vmatpush1.bf16.msra.mxu0 %v1781
        %1785 = vmatprep.subr.bf16.mxu0 0
        %1786 = vmatpush1.bf16.msra.mxu0 0
        %1787 = vmatprep.subr.bf16.mxu0 0
        %1788 = vmatpush1.bf16.msra.mxu0 0
        %1789 = vmatprep.subr.bf16.mxu0 0
        %1790 = vmatpush1.bf16.msra.mxu0 0
        %1791 = vmatprep.subr.bf16.mxu0 0
        %1792 = vmatpush1.bf16.msra.mxu0 0
        %1793 = vmatprep.subr.bf16.mxu0 0
        %1794 = vmatpush1.bf16.msra.mxu0 0
        %1795 = vmatprep.subr.bf16.mxu0 0
        %1796 = vmatpush1.bf16.msra.mxu0 0
        %1797 = vmatprep.subr.bf16.mxu0 0
        %1798 = vmatpush1.bf16.msra.mxu0 0
        %1799 = vmatprep.subr.bf16.mxu0 0
        %1800 = vmatpush1.bf16.msra.mxu0 0
        %1801 = vmatprep.subr.bf16.mxu0 0
        %1802 = vmatpush1.bf16.msra.mxu0 0
        %1803 = vmatprep.subr.bf16.mxu0 0
        %1804 = vmatpush1.bf16.msra.mxu0 0
        %1805 = vmatprep.subr.bf16.mxu0 0
        %1806 = vmatpush1.bf16.msra.mxu0 0
        %1807 = vmatprep.subr.bf16.mxu0 0
        %1808 = vmatpush1.bf16.msra.mxu0 0
        %1809 = vmatprep.subr.bf16.mxu0 0
        %1810 = vmatpush1.bf16.msra.mxu0 0
        %1811 = vmatprep.subr.bf16.mxu0 0
        %1812 = vmatpush1.bf16.msra.mxu0 0
        %1813 = vmatprep.subr.bf16.mxu0 0
        %1814 = vmatpush1.bf16.msra.mxu0 0
        %1815 = vmatprep.mubr.bf16.mxu0 0
        %1816 = vmatmul.mubr.bf16.gmra.mrb[0].mxu0 %v1778
        %v1817 = vpop.f32.mrb[0].mxu0
        %v1818 = vadd.f32 0.0, %v1817
        %v1819 = vpop.f32.mrb[0].mxu0
        %v1820 = vpop.f32.mrb[0].mxu0
        %v1821 = vpop.f32.mrb[0].mxu0
        %1822 = vdwg.mxu0
        %v1824 = vsel %vm1579, %v1679, 0
        %v1827 = vsel %vm1687, %v1205, 0
        %1829 = vmatprep.subr.bf16.mxu0 0
        %1830 = vmatpush1.bf16.msra.mxu0 %v1827
        %1831 = vmatprep.subr.bf16.mxu0 0
        %1832 = vmatpush1.bf16.msra.mxu0 0
        %1833 = vmatprep.subr.bf16.mxu0 0
        %1834 = vmatpush1.bf16.msra.mxu0 0
        %1835 = vmatprep.subr.bf16.mxu0 0
        %1836 = vmatpush1.bf16.msra.mxu0 0
        %1837 = vmatprep.subr.bf16.mxu0 0
        %1838 = vmatpush1.bf16.msra.mxu0 0
        %1839 = vmatprep.subr.bf16.mxu0 0
        %1840 = vmatpush1.bf16.msra.mxu0 0
        %1841 = vmatprep.subr.bf16.mxu0 0
        %1842 = vmatpush1.bf16.msra.mxu0 0
        %1843 = vmatprep.subr.bf16.mxu0 0
        %1844 = vmatpush1.bf16.msra.mxu0 0
        %1845 = vmatprep.subr.bf16.mxu0 0
        %1846 = vmatpush1.bf16.msra.mxu0 0
        %1847 = vmatprep.subr.bf16.mxu0 0
        %1848 = vmatpush1.bf16.msra.mxu0 0
        %1849 = vmatprep.subr.bf16.mxu0 0
        %1850 = vmatpush1.bf16.msra.mxu0 0
        %1851 = vmatprep.subr.bf16.mxu0 0
        %1852 = vmatpush1.bf16.msra.mxu0 0
        %1853 = vmatprep.subr.bf16.mxu0 0
        %1854 = vmatpush1.bf16.msra.mxu0 0
        %1855 = vmatprep.subr.bf16.mxu0 0
        %1856 = vmatpush1.bf16.msra.mxu0 0
        %1857 = vmatprep.subr.bf16.mxu0 0
        %1858 = vmatpush1.bf16.msra.mxu0 0
        %1859 = vmatprep.subr.bf16.mxu0 0
        %1860 = vmatpush1.bf16.msra.mxu0 0
        %1861 = vmatprep.mubr.bf16.mxu0 0
        %1862 = vmatmul.mubr.bf16.gmra.mrb[0].mxu0 %v1824
        %v1863 = vpop.f32.mrb[0].mxu0
        %v1864 = vadd.f32 0.0, %v1863
        %v1865 = vpop.f32.mrb[0].mxu0
        %v1866 = vpop.f32.mrb[0].mxu0
        %v1867 = vpop.f32.mrb[0].mxu0
        %1868 = vdwg.mxu0
        %v1870 = vsel %vm1579, %v1680, 0
        %v1873 = vsel %vm1687, %v1206, 0
        %1875 = vmatprep.subr.bf16.mxu0 0
        %1876 = vmatpush1.bf16.msra.mxu0 %v1873
        %1877 = vmatprep.subr.bf16.mxu0 0
        %1878 = vmatpush1.bf16.msra.mxu0 0
        %1879 = vmatprep.subr.bf16.mxu0 0
        %1880 = vmatpush1.bf16.msra.mxu0 0
        %1881 = vmatprep.subr.bf16.mxu0 0
        %1882 = vmatpush1.bf16.msra.mxu0 0
        %1883 = vmatprep.subr.bf16.mxu0 0
        %1884 = vmatpush1.bf16.msra.mxu0 0
        %1885 = vmatprep.subr.bf16.mxu0 0
        %1886 = vmatpush1.bf16.msra.mxu0 0
        %1887 = vmatprep.subr.bf16.mxu0 0
        %1888 = vmatpush1.bf16.msra.mxu0 0
        %1889 = vmatprep.subr.bf16.mxu0 0
        %1890 = vmatpush1.bf16.msra.mxu0 0
        %1891 = vmatprep.subr.bf16.mxu0 0
        %1892 = vmatpush1.bf16.msra.mxu0 0
        %1893 = vmatprep.subr.bf16.mxu0 0
        %1894 = vmatpush1.bf16.msra.mxu0 0
        %1895 = vmatprep.subr.bf16.mxu0 0
        %1896 = vmatpush1.bf16.msra.mxu0 0
        %1897 = vmatprep.subr.bf16.mxu0 0
        %1898 = vmatpush1.bf16.msra.mxu0 0
        %1899 = vmatprep.subr.bf16.mxu0 0
        %1900 = vmatpush1.bf16.msra.mxu0 0
        %1901 = vmatprep.subr.bf16.mxu0 0
        %1902 = vmatpush1.bf16.msra.mxu0 0
        %1903 = vmatprep.subr.bf16.mxu0 0
        %1904 = vmatpush1.bf16.msra.mxu0 0
        %1905 = vmatprep.subr.bf16.mxu0 0
        %1906 = vmatpush1.bf16.msra.mxu0 0
        %1907 = vmatprep.mubr.bf16.mxu0 0
        %1908 = vmatmul.mubr.bf16.gmra.mrb[0].mxu0 %v1870
        %v1909 = vpop.f32.mrb[0].mxu0
        %v1910 = vadd.f32 0.0, %v1909
        %v1911 = vpop.f32.mrb[0].mxu0
        %v1912 = vpop.f32.mrb[0].mxu0
        %v1913 = vpop.f32.mrb[0].mxu0
        %1914 = vdwg.mxu0
        %v1916 = vsel %vm1579, %v1681, 0
        %v1919 = vsel %vm1687, %v1207, 0
        %1921 = vmatprep.subr.bf16.mxu0 0
        %1922 = vmatpush1.bf16.msra.mxu0 %v1919
        %1923 = vmatprep.subr.bf16.mxu0 0
        %1924 = vmatpush1.bf16.msra.mxu0 0
        %1925 = vmatprep.subr.bf16.mxu0 0
        %1926 = vmatpush1.bf16.msra.mxu0 0
        %1927 = vmatprep.subr.bf16.mxu0 0
        %1928 = vmatpush1.bf16.msra.mxu0 0
        %1929 = vmatprep.subr.bf16.mxu0 0
        %1930 = vmatpush1.bf16.msra.mxu0 0
        %1931 = vmatprep.subr.bf16.mxu0 0
        %1932 = vmatpush1.bf16.msra.mxu0 0
        %1933 = vmatprep.subr.bf16.mxu0 0
        %1934 = vmatpush1.bf16.msra.mxu0 0
        %1935 = vmatprep.subr.bf16.mxu0 0
        %1936 = vmatpush1.bf16.msra.mxu0 0
        %1937 = vmatprep.subr.bf16.mxu0 0
        %1938 = vmatpush1.bf16.msra.mxu0 0
        %1939 = vmatprep.subr.bf16.mxu0 0
        %1940 = vmatpush1.bf16.msra.mxu0 0
        %1941 = vmatprep.subr.bf16.mxu0 0
        %1942 = vmatpush1.bf16.msra.mxu0 0
        %1943 = vmatprep.subr.bf16.mxu0 0
        %1944 = vmatpush1.bf16.msra.mxu0 0
        %1945 = vmatprep.subr.bf16.mxu0 0
        %1946 = vmatpush1.bf16.msra.mxu0 0
        %1947 = vmatprep.subr.bf16.mxu0 0
        %1948 = vmatpush1.bf16.msra.mxu0 0
        %1949 = vmatprep.subr.bf16.mxu0 0
        %1950 = vmatpush1.bf16.msra.mxu0 0
        %1951 = vmatprep.subr.bf16.mxu0 0
        %1952 = vmatpush1.bf16.msra.mxu0 0
        %1953 = vmatprep.mubr.bf16.mxu0 0
        %1954 = vmatmul.mubr.bf16.gmra.mrb[0].mxu0 %v1916
        %v1955 = vpop.f32.mrb[0].mxu0
        %v1956 = vadd.f32 0.0, %v1955
        %v1957 = vpop.f32.mrb[0].mxu0
        %v1958 = vpop.f32.mrb[0].mxu0
        %v1959 = vpop.f32.mrb[0].mxu0
        %1960 = vdwg.mxu0
        %v1962 = vsel %vm1579, %v1682, 0
        %v1965 = vsel %vm1687, %v1208, 0
        %1967 = vmatprep.subr.bf16.mxu0 0
        %1968 = vmatpush1.bf16.msra.mxu0 %v1965
        %1969 = vmatprep.subr.bf16.mxu0 0
        %1970 = vmatpush1.bf16.msra.mxu0 0
        %1971 = vmatprep.subr.bf16.mxu0 0
        %1972 = vmatpush1.bf16.msra.mxu0 0
        %1973 = vmatprep.subr.bf16.mxu0 0
        %1974 = vmatpush1.bf16.msra.mxu0 0
        %1975 = vmatprep.subr.bf16.mxu0 0
        %1976 = vmatpush1.bf16.msra.mxu0 0
        %1977 = vmatprep.subr.bf16.mxu0 0
        %1978 = vmatpush1.bf16.msra.mxu0 0
        %1979 = vmatprep.subr.bf16.mxu0 0
        %1980 = vmatpush1.bf16.msra.mxu0 0
        %1981 = vmatprep.subr.bf16.mxu0 0
        %1982 = vmatpush1.bf16.msra.mxu0 0
        %1983 = vmatprep.subr.bf16.mxu0 0
        %1984 = vmatpush1.bf16.msra.mxu0 0
        %1985 = vmatprep.subr.bf16.mxu0 0
        %1986 = vmatpush1.bf16.msra.mxu0 0
        %1987 = vmatprep.subr.bf16.mxu0 0
        %1988 = vmatpush1.bf16.msra.mxu0 0
        %1989 = vmatprep.subr.bf16.mxu0 0
        %1990 = vmatpush1.bf16.msra.mxu0 0
        %1991 = vmatprep.subr.bf16.mxu0 0
        %1992 = vmatpush1.bf16.msra.mxu0 0
        %1993 = vmatprep.subr.bf16.mxu0 0
        %1994 = vmatpush1.bf16.msra.mxu0 0
        %1995 = vmatprep.subr.bf16.mxu0 0
        %1996 = vmatpush1.bf16.msra.mxu0 0
        %1997 = vmatprep.subr.bf16.mxu0 0
        %1998 = vmatpush1.bf16.msra.mxu0 0
        %1999 = vmatprep.mubr.bf16.mxu0 0
        %2000 = vmatmul.mubr.bf16.gmra.mrb[0].mxu0 %v1962
        %v2001 = vpop.f32.mrb[0].mxu0
        %v2002 = vadd.f32 0.0, %v2001
        %v2003 = vpop.f32.mrb[0].mxu0
        %v2004 = vpop.f32.mrb[0].mxu0
        %v2005 = vpop.f32.mrb[0].mxu0
        %2006 = vdwg.mxu0
        %v2008 = vsel %vm1579, %v1683, 0
        %v2011 = vsel %vm1687, %v1209, 0
        %2013 = vmatprep.subr.bf16.mxu0 0
        %2014 = vmatpush1.bf16.msra.mxu0 %v2011
        %2015 = vmatprep.subr.bf16.mxu0 0
        %2016 = vmatpush1.bf16.msra.mxu0 0
        %2017 = vmatprep.subr.bf16.mxu0 0
        %2018 = vmatpush1.bf16.msra.mxu0 0
        %2019 = vmatprep.subr.bf16.mxu0 0
        %2020 = vmatpush1.bf16.msra.mxu0 0
        %2021 = vmatprep.subr.bf16.mxu0 0
        %2022 = vmatpush1.bf16.msra.mxu0 0
        %2023 = vmatprep.subr.bf16.mxu0 0
        %2024 = vmatpush1.bf16.msra.mxu0 0
        %2025 = vmatprep.subr.bf16.mxu0 0
        %2026 = vmatpush1.bf16.msra.mxu0 0
        %2027 = vmatprep.subr.bf16.mxu0 0
        %2028 = vmatpush1.bf16.msra.mxu0 0
        %2029 = vmatprep.subr.bf16.mxu0 0
        %2030 = vmatpush1.bf16.msra.mxu0 0
        %2031 = vmatprep.subr.bf16.mxu0 0
        %2032 = vmatpush1.bf16.msra.mxu0 0
        %2033 = vmatprep.subr.bf16.mxu0 0
        %2034 = vmatpush1.bf16.msra.mxu0 0
        %2035 = vmatprep.subr.bf16.mxu0 0
        %2036 = vmatpush1.bf16.msra.mxu0 0
        %2037 = vmatprep.subr.bf16.mxu0 0
        %2038 = vmatpush1.bf16.msra.mxu0 0
        %2039 = vmatprep.subr.bf16.mxu0 0
        %2040 = vmatpush1.bf16.msra.mxu0 0
        %2041 = vmatprep.subr.bf16.mxu0 0
        %2042 = vmatpush1.bf16.msra.mxu0 0
        %2043 = vmatprep.subr.bf16.mxu0 0
        %2044 = vmatpush1.bf16.msra.mxu0 0
        %2045 = vmatprep.mubr.bf16.mxu0 0
        %2046 = vmatmul.mubr.bf16.gmra.mrb[0].mxu0 %v2008
        %v2047 = vpop.f32.mrb[0].mxu0
        %v2048 = vadd.f32 0.0, %v2047
        %v2049 = vpop.f32.mrb[0].mxu0
        %v2050 = vpop.f32.mrb[0].mxu0
        %v2051 = vpop.f32.mrb[0].mxu0
        %2052 = vdwg.mxu0
        %v2053 = vpack.c.bf16 %v1726, %v1726
        %v2054 = vpack.c.bf16 %v1772, %v1772
        %v2055 = vpack.c.bf16 %v1818, %v1818
        %v2056 = vpack.c.bf16 %v1864, %v1864
        %v2057 = vpack.c.bf16 %v1910, %v1910
        %v2058 = vpack.c.bf16 %v1956, %v1956
        %v2059 = vpack.c.bf16 %v2002, %v2002
        %v2060 = vpack.c.bf16 %v2048, %v2048
        %v2061 = vld [vmem:[%s3] sm:$0x3]
        %v2062 = vld [vmem:[%s3 + $0x2] sm:$0x3]
        %v2063 = vld [vmem:[%s3 + $0x4] sm:$0x3]
        %v2064 = vld [vmem:[%s3 + $0x6] sm:$0x3]
        %v2065 = vld [vmem:[%s3 + $0x8] sm:$0x3]
        %v2066 = vld [vmem:[%s3 + $0xa] sm:$0x3]
        %v2067 = vld [vmem:[%s3 + $0xc] sm:$0x3]
        %v2068 = vld [vmem:[%s3 + $0xe] sm:$0x3]
        %v2070 = vsel %vm1210, %v2053, 0
        %vm2072 = vcmask 1041408
        %v2074 = vsel %vm2072, %v2061, 0
        %2076 = vmatprep.subr.bf16.mxu0 0
        %2077 = vmatpush1.bf16.msra.mxu0 %v2074
        %2078 = vmatprep.subr.bf16.mxu0 0
        %2079 = vmatpush1.bf16.msra.mxu0 0
        %2080 = vmatprep.subr.bf16.mxu0 0
        %2081 = vmatpush1.bf16.msra.mxu0 0
        %2082 = vmatprep.subr.bf16.mxu0 0
        %2083 = vmatpush1.bf16.msra.mxu0 0
        %2084 = vmatprep.subr.bf16.mxu0 0
        %2085 = vmatpush1.bf16.msra.mxu0 0
        %2086 = vmatprep.subr.bf16.mxu0 0
        %2087 = vmatpush1.bf16.msra.mxu0 0
        %2088 = vmatprep.subr.bf16.mxu0 0
        %2089 = vmatpush1.bf16.msra.mxu0 0
        %2090 = vmatprep.subr.bf16.mxu0 0
        %2091 = vmatpush1.bf16.msra.mxu0 0
        %2092 = vmatprep.subr.bf16.mxu0 0
        %2093 = vmatpush1.bf16.msra.mxu0 0
        %2094 = vmatprep.subr.bf16.mxu0 0
        %2095 = vmatpush1.bf16.msra.mxu0 0
        %2096 = vmatprep.subr.bf16.mxu0 0
        %2097 = vmatpush1.bf16.msra.mxu0 0
        %2098 = vmatprep.subr.bf16.mxu0 0
        %2099 = vmatpush1.bf16.msra.mxu0 0
        %2100 = vmatprep.subr.bf16.mxu0 0
        %2101 = vmatpush1.bf16.msra.mxu0 0
        %2102 = vmatprep.subr.bf16.mxu0 0
        %2103 = vmatpush1.bf16.msra.mxu0 0
        %2104 = vmatprep.subr.bf16.mxu0 0
        %2105 = vmatpush1.bf16.msra.mxu0 0
        %2106 = vmatprep.subr.bf16.mxu0 0
        %2107 = vmatpush1.bf16.msra.mxu0 0
        %2108 = vmatprep.mubr.bf16.mxu0 0
        %2109 = vmatmul.mubr.bf16.gmra.mrb[0].mxu0 %v2070
        %v2110 = vpop.f32.mrb[0].mxu0
        %v2111 = vadd.f32 0.0, %v2110
        %v2112 = vpop.f32.mrb[0].mxu0
        %v2113 = vpop.f32.mrb[0].mxu0
        %v2114 = vpop.f32.mrb[0].mxu0
        %2115 = vdwg.mxu0
        %v2117 = vsel %vm1210, %v2054, 0
        %v2120 = vsel %vm2072, %v2062, 0
        %2122 = vmatprep.subr.bf16.mxu0 0
        %2123 = vmatpush1.bf16.msra.mxu0 %v2120
        %2124 = vmatprep.subr.bf16.mxu0 0
        %2125 = vmatpush1.bf16.msra.mxu0 0
        %2126 = vmatprep.subr.bf16.mxu0 0
        %2127 = vmatpush1.bf16.msra.mxu0 0
        %2128 = vmatprep.subr.bf16.mxu0 0
        %2129 = vmatpush1.bf16.msra.mxu0 0
        %2130 = vmatprep.subr.bf16.mxu0 0
        %2131 = vmatpush1.bf16.msra.mxu0 0
        %2132 = vmatprep.subr.bf16.mxu0 0
        %2133 = vmatpush1.bf16.msra.mxu0 0
        %2134 = vmatprep.subr.bf16.mxu0 0
        %2135 = vmatpush1.bf16.msra.mxu0 0
        %2136 = vmatprep.subr.bf16.mxu0 0
        %2137 = vmatpush1.bf16.msra.mxu0 0
        %2138 = vmatprep.subr.bf16.mxu0 0
        %2139 = vmatpush1.bf16.msra.mxu0 0
        %2140 = vmatprep.subr.bf16.mxu0 0
        %2141 = vmatpush1.bf16.msra.mxu0 0
        %2142 = vmatprep.subr.bf16.mxu0 0
        %2143 = vmatpush1.bf16.msra.mxu0 0
        %2144 = vmatprep.subr.bf16.mxu0 0
        %2145 = vmatpush1.bf16.msra.mxu0 0
        %2146 = vmatprep.subr.bf16.mxu0 0
        %2147 = vmatpush1.bf16.msra.mxu0 0
        %2148 = vmatprep.subr.bf16.mxu0 0
        %2149 = vmatpush1.bf16.msra.mxu0 0
        %2150 = vmatprep.subr.bf16.mxu0 0
        %2151 = vmatpush1.bf16.msra.mxu0 0
        %2152 = vmatprep.subr.bf16.mxu0 0
        %2153 = vmatpush1.bf16.msra.mxu0 0
        %2154 = vmatprep.mubr.bf16.mxu0 0
        %2155 = vmatmul.mubr.bf16.gmra.mrb[0].mxu0 %v2117
        %v2156 = vpop.f32.mrb[0].mxu0
        %v2157 = vadd.f32 0.0, %v2156
        %v2158 = vpop.f32.mrb[0].mxu0
        %v2159 = vpop.f32.mrb[0].mxu0
        %v2160 = vpop.f32.mrb[0].mxu0
        %2161 = vdwg.mxu0
        %v2163 = vsel %vm1210, %v2055, 0
        %v2166 = vsel %vm2072, %v2063, 0
        %2168 = vmatprep.subr.bf16.mxu0 0
        %2169 = vmatpush1.bf16.msra.mxu0 %v2166
        %2170 = vmatprep.subr.bf16.mxu0 0
        %2171 = vmatpush1.bf16.msra.mxu0 0
        %2172 = vmatprep.subr.bf16.mxu0 0
        %2173 = vmatpush1.bf16.msra.mxu0 0
        %2174 = vmatprep.subr.bf16.mxu0 0
        %2175 = vmatpush1.bf16.msra.mxu0 0
        %2176 = vmatprep.subr.bf16.mxu0 0
        %2177 = vmatpush1.bf16.msra.mxu0 0
        %2178 = vmatprep.subr.bf16.mxu0 0
        %2179 = vmatpush1.bf16.msra.mxu0 0
        %2180 = vmatprep.subr.bf16.mxu0 0
        %2181 = vmatpush1.bf16.msra.mxu0 0
        %2182 = vmatprep.subr.bf16.mxu0 0
        %2183 = vmatpush1.bf16.msra.mxu0 0
        %2184 = vmatprep.subr.bf16.mxu0 0
        %2185 = vmatpush1.bf16.msra.mxu0 0
        %2186 = vmatprep.subr.bf16.mxu0 0
        %2187 = vmatpush1.bf16.msra.mxu0 0
        %2188 = vmatprep.subr.bf16.mxu0 0
        %2189 = vmatpush1.bf16.msra.mxu0 0
        %2190 = vmatprep.subr.bf16.mxu0 0
        %2191 = vmatpush1.bf16.msra.mxu0 0
        %2192 = vmatprep.subr.bf16.mxu0 0
        %2193 = vmatpush1.bf16.msra.mxu0 0
        %2194 = vmatprep.subr.bf16.mxu0 0
        %2195 = vmatpush1.bf16.msra.mxu0 0
        %2196 = vmatprep.subr.bf16.mxu0 0
        %2197 = vmatpush1.bf16.msra.mxu0 0
        %2198 = vmatprep.subr.bf16.mxu0 0
        %2199 = vmatpush1.bf16.msra.mxu0 0
        %2200 = vmatprep.mubr.bf16.mxu0 0
        %2201 = vmatmul.mubr.bf16.gmra.mrb[0].mxu0 %v2163
        %v2202 = vpop.f32.mrb[0].mxu0
        %v2203 = vadd.f32 0.0, %v2202
        %v2204 = vpop.f32.mrb[0].mxu0
        %v2205 = vpop.f32.mrb[0].mxu0
        %v2206 = vpop.f32.mrb[0].mxu0
        %2207 = vdwg.mxu0
        %v2209 = vsel %vm1210, %v2056, 0
        %v2212 = vsel %vm2072, %v2064, 0
        %2214 = vmatprep.subr.bf16.mxu0 0
        %2215 = vmatpush1.bf16.msra.mxu0 %v2212
        %2216 = vmatprep.subr.bf16.mxu0 0
        %2217 = vmatpush1.bf16.msra.mxu0 0
        %2218 = vmatprep.subr.bf16.mxu0 0
        %2219 = vmatpush1.bf16.msra.mxu0 0
        %2220 = vmatprep.subr.bf16.mxu0 0
        %2221 = vmatpush1.bf16.msra.mxu0 0
        %2222 = vmatprep.subr.bf16.mxu0 0
        %2223 = vmatpush1.bf16.msra.mxu0 0
        %2224 = vmatprep.subr.bf16.mxu0 0
        %2225 = vmatpush1.bf16.msra.mxu0 0
        %2226 = vmatprep.subr.bf16.mxu0 0
        %2227 = vmatpush1.bf16.msra.mxu0 0
        %2228 = vmatprep.subr.bf16.mxu0 0
        %2229 = vmatpush1.bf16.msra.mxu0 0
        %2230 = vmatprep.subr.bf16.mxu0 0
        %2231 = vmatpush1.bf16.msra.mxu0 0
        %2232 = vmatprep.subr.bf16.mxu0 0
        %2233 = vmatpush1.bf16.msra.mxu0 0
        %2234 = vmatprep.subr.bf16.mxu0 0
        %2235 = vmatpush1.bf16.msra.mxu0 0
        %2236 = vmatprep.subr.bf16.mxu0 0
        %2237 = vmatpush1.bf16.msra.mxu0 0
        %2238 = vmatprep.subr.bf16.mxu0 0
        %2239 = vmatpush1.bf16.msra.mxu0 0
        %2240 = vmatprep.subr.bf16.mxu0 0
        %2241 = vmatpush1.bf16.msra.mxu0 0
        %2242 = vmatprep.subr.bf16.mxu0 0
        %2243 = vmatpush1.bf16.msra.mxu0 0
        %2244 = vmatprep.subr.bf16.mxu0 0
        %2245 = vmatpush1.bf16.msra.mxu0 0
        %2246 = vmatprep.mubr.bf16.mxu0 0
        %2247 = vmatmul.mubr.bf16.gmra.mrb[0].mxu0 %v2209
        %v2248 = vpop.f32.mrb[0].mxu0
        %v2249 = vadd.f32 0.0, %v2248
        %v2250 = vpop.f32.mrb[0].mxu0
        %v2251 = vpop.f32.mrb[0].mxu0
        %v2252 = vpop.f32.mrb[0].mxu0
        %2253 = vdwg.mxu0
        %v2255 = vsel %vm1210, %v2057, 0
        %v2258 = vsel %vm2072, %v2065, 0
        %2260 = vmatprep.subr.bf16.mxu0 0
        %2261 = vmatpush1.bf16.msra.mxu0 %v2258
        %2262 = vmatprep.subr.bf16.mxu0 0
        %2263 = vmatpush1.bf16.msra.mxu0 0
        %2264 = vmatprep.subr.bf16.mxu0 0
        %2265 = vmatpush1.bf16.msra.mxu0 0
        %2266 = vmatprep.subr.bf16.mxu0 0
        %2267 = vmatpush1.bf16.msra.mxu0 0
        %2268 = vmatprep.subr.bf16.mxu0 0
        %2269 = vmatpush1.bf16.msra.mxu0 0
        %2270 = vmatprep.subr.bf16.mxu0 0
        %2271 = vmatpush1.bf16.msra.mxu0 0
        %2272 = vmatprep.subr.bf16.mxu0 0
        %2273 = vmatpush1.bf16.msra.mxu0 0
        %2274 = vmatprep.subr.bf16.mxu0 0
        %2275 = vmatpush1.bf16.msra.mxu0 0
        %2276 = vmatprep.subr.bf16.mxu0 0
        %2277 = vmatpush1.bf16.msra.mxu0 0
        %2278 = vmatprep.subr.bf16.mxu0 0
        %2279 = vmatpush1.bf16.msra.mxu0 0
        %2280 = vmatprep.subr.bf16.mxu0 0
        %2281 = vmatpush1.bf16.msra.mxu0 0
        %2282 = vmatprep.subr.bf16.mxu0 0
        %2283 = vmatpush1.bf16.msra.mxu0 0
        %2284 = vmatprep.subr.bf16.mxu0 0
        %2285 = vmatpush1.bf16.msra.mxu0 0
        %2286 = vmatprep.subr.bf16.mxu0 0
        %2287 = vmatpush1.bf16.msra.mxu0 0
        %2288 = vmatprep.subr.bf16.mxu0 0
        %2289 = vmatpush1.bf16.msra.mxu0 0
        %2290 = vmatprep.subr.bf16.mxu0 0
        %2291 = vmatpush1.bf16.msra.mxu0 0
        %2292 = vmatprep.mubr.bf16.mxu0 0
        %2293 = vmatmul.mubr.bf16.gmra.mrb[0].mxu0 %v2255
        %v2294 = vpop.f32.mrb[0].mxu0
        %v2295 = vadd.f32 0.0, %v2294
        %v2296 = vpop.f32.mrb[0].mxu0
        %v2297 = vpop.f32.mrb[0].mxu0
        %v2298 = vpop.f32.mrb[0].mxu0
        %2299 = vdwg.mxu0
        %v2301 = vsel %vm1210, %v2058, 0
        %v2304 = vsel %vm2072, %v2066, 0
        %2306 = vmatprep.subr.bf16.mxu0 0
        %2307 = vmatpush1.bf16.msra.mxu0 %v2304
        %2308 = vmatprep.subr.bf16.mxu0 0
        %2309 = vmatpush1.bf16.msra.mxu0 0
        %2310 = vmatprep.subr.bf16.mxu0 0
        %2311 = vmatpush1.bf16.msra.mxu0 0
        %2312 = vmatprep.subr.bf16.mxu0 0
        %2313 = vmatpush1.bf16.msra.mxu0 0
        %2314 = vmatprep.subr.bf16.mxu0 0
        %2315 = vmatpush1.bf16.msra.mxu0 0
        %2316 = vmatprep.subr.bf16.mxu0 0
        %2317 = vmatpush1.bf16.msra.mxu0 0
        %2318 = vmatprep.subr.bf16.mxu0 0
        %2319 = vmatpush1.bf16.msra.mxu0 0
        %2320 = vmatprep.subr.bf16.mxu0 0
        %2321 = vmatpush1.bf16.msra.mxu0 0
        %2322 = vmatprep.subr.bf16.mxu0 0
        %2323 = vmatpush1.bf16.msra.mxu0 0
        %2324 = vmatprep.subr.bf16.mxu0 0
        %2325 = vmatpush1.bf16.msra.mxu0 0
        %2326 = vmatprep.subr.bf16.mxu0 0
        %2327 = vmatpush1.bf16.msra.mxu0 0
        %2328 = vmatprep.subr.bf16.mxu0 0
        %2329 = vmatpush1.bf16.msra.mxu0 0
        %2330 = vmatprep.subr.bf16.mxu0 0
        %2331 = vmatpush1.bf16.msra.mxu0 0
        %2332 = vmatprep.subr.bf16.mxu0 0
        %2333 = vmatpush1.bf16.msra.mxu0 0
        %2334 = vmatprep.subr.bf16.mxu0 0
        %2335 = vmatpush1.bf16.msra.mxu0 0
        %2336 = vmatprep.subr.bf16.mxu0 0
        %2337 = vmatpush1.bf16.msra.mxu0 0
        %2338 = vmatprep.mubr.bf16.mxu0 0
        %2339 = vmatmul.mubr.bf16.gmra.mrb[0].mxu0 %v2301
        %v2340 = vpop.f32.mrb[0].mxu0
        %v2341 = vadd.f32 0.0, %v2340
        %v2342 = vpop.f32.mrb[0].mxu0
        %v2343 = vpop.f32.mrb[0].mxu0
        %v2344 = vpop.f32.mrb[0].mxu0
        %2345 = vdwg.mxu0
        %v2347 = vsel %vm1210, %v2059, 0
        %v2350 = vsel %vm2072, %v2067, 0
        %2352 = vmatprep.subr.bf16.mxu0 0
        %2353 = vmatpush1.bf16.msra.mxu0 %v2350
        %2354 = vmatprep.subr.bf16.mxu0 0
        %2355 = vmatpush1.bf16.msra.mxu0 0
        %2356 = vmatprep.subr.bf16.mxu0 0
        %2357 = vmatpush1.bf16.msra.mxu0 0
        %2358 = vmatprep.subr.bf16.mxu0 0
        %2359 = vmatpush1.bf16.msra.mxu0 0
        %2360 = vmatprep.subr.bf16.mxu0 0
        %2361 = vmatpush1.bf16.msra.mxu0 0
        %2362 = vmatprep.subr.bf16.mxu0 0
        %2363 = vmatpush1.bf16.msra.mxu0 0
        %2364 = vmatprep.subr.bf16.mxu0 0
        %2365 = vmatpush1.bf16.msra.mxu0 0
        %2366 = vmatprep.subr.bf16.mxu0 0
        %2367 = vmatpush1.bf16.msra.mxu0 0
        %2368 = vmatprep.subr.bf16.mxu0 0
        %2369 = vmatpush1.bf16.msra.mxu0 0
        %2370 = vmatprep.subr.bf16.mxu0 0
        %2371 = vmatpush1.bf16.msra.mxu0 0
        %2372 = vmatprep.subr.bf16.mxu0 0
        %2373 = vmatpush1.bf16.msra.mxu0 0
        %2374 = vmatprep.subr.bf16.mxu0 0
        %2375 = vmatpush1.bf16.msra.mxu0 0
        %2376 = vmatprep.subr.bf16.mxu0 0
        %2377 = vmatpush1.bf16.msra.mxu0 0
        %2378 = vmatprep.subr.bf16.mxu0 0
        %2379 = vmatpush1.bf16.msra.mxu0 0
        %2380 = vmatprep.subr.bf16.mxu0 0
        %2381 = vmatpush1.bf16.msra.mxu0 0
        %2382 = vmatprep.subr.bf16.mxu0 0
        %2383 = vmatpush1.bf16.msra.mxu0 0
        %2384 = vmatprep.mubr.bf16.mxu0 0
        %2385 = vmatmul.mubr.bf16.gmra.mrb[0].mxu0 %v2347
        %v2386 = vpop.f32.mrb[0].mxu0
        %v2387 = vadd.f32 0.0, %v2386
        %v2388 = vpop.f32.mrb[0].mxu0
        %v2389 = vpop.f32.mrb[0].mxu0
        %v2390 = vpop.f32.mrb[0].mxu0
        %2391 = vdwg.mxu0
        %v2393 = vsel %vm1210, %v2060, 0
        %v2396 = vsel %vm2072, %v2068, 0
        %2398 = vmatprep.subr.bf16.mxu0 0
        %2399 = vmatpush1.bf16.msra.mxu0 %v2396
        %2400 = vmatprep.subr.bf16.mxu0 0
        %2401 = vmatpush1.bf16.msra.mxu0 0
        %2402 = vmatprep.subr.bf16.mxu0 0
        %2403 = vmatpush1.bf16.msra.mxu0 0
        %2404 = vmatprep.subr.bf16.mxu0 0
        %2405 = vmatpush1.bf16.msra.mxu0 0
        %2406 = vmatprep.subr.bf16.mxu0 0
        %2407 = vmatpush1.bf16.msra.mxu0 0
        %2408 = vmatprep.subr.bf16.mxu0 0
        %2409 = vmatpush1.bf16.msra.mxu0 0
        %2410 = vmatprep.subr.bf16.mxu0 0
        %2411 = vmatpush1.bf16.msra.mxu0 0
        %2412 = vmatprep.subr.bf16.mxu0 0
        %2413 = vmatpush1.bf16.msra.mxu0 0
        %2414 = vmatprep.subr.bf16.mxu0 0
        %2415 = vmatpush1.bf16.msra.mxu0 0
        %2416 = vmatprep.subr.bf16.mxu0 0
        %2417 = vmatpush1.bf16.msra.mxu0 0
        %2418 = vmatprep.subr.bf16.mxu0 0
        %2419 = vmatpush1.bf16.msra.mxu0 0
        %2420 = vmatprep.subr.bf16.mxu0 0
        %2421 = vmatpush1.bf16.msra.mxu0 0
        %2422 = vmatprep.subr.bf16.mxu0 0
        %2423 = vmatpush1.bf16.msra.mxu0 0
        %2424 = vmatprep.subr.bf16.mxu0 0
        %2425 = vmatpush1.bf16.msra.mxu0 0
        %2426 = vmatprep.subr.bf16.mxu0 0
        %2427 = vmatpush1.bf16.msra.mxu0 0
        %2428 = vmatprep.subr.bf16.mxu0 0
        %2429 = vmatpush1.bf16.msra.mxu0 0
        %2430 = vmatprep.mubr.bf16.mxu0 0
        %2431 = vmatmul.mubr.bf16.gmra.mrb[0].mxu0 %v2393
        %v2432 = vpop.f32.mrb[0].mxu0
        %v2433 = vadd.f32 0.0, %v2432
        %v2434 = vpop.f32.mrb[0].mxu0
        %v2435 = vpop.f32.mrb[0].mxu0
        %v2436 = vpop.f32.mrb[0].mxu0
        %2437 = vdwg.mxu0
        %v2438 = vsel %vm775, %v2111, 0.0
        %v2439 = vsel %vm775, %v2157, 0.0
        %v2440 = vadd.f32 %v2438, %v2439
        %v2441 = vsel %vm775, %v2203, 0.0
        %v2442 = vadd.f32 %v2440, %v2441
        %v2443 = vsel %vm775, %v2249, 0.0
        %v2444 = vadd.f32 %v2442, %v2443
        %v2445 = vsel %vm775, %v2295, 0.0
        %v2446 = vadd.f32 %v2444, %v2445
        %v2447 = vsel %vm775, %v2341, 0.0
        %v2448 = vadd.f32 %v2446, %v2447
        %v2449 = vsel %vm775, %v2387, 0.0
        %v2450 = vadd.f32 %v2448, %v2449
        %v2451 = vsel %vm775, %v2433, 0.0
        %v2452 = vadd.f32 %v2450, %v2451
        %v2453 = vadd.f32 %v2452, 0.0
        %v2454 = vld [vmem:[%s4] sm:$0x1]
        %v2456 = vlaneseq
        %v2457 = vshrl.u32 %v2456, 7
        %v2458 = vsub.s32 0, %v2457
        %v2459 = vrot.slane %v2454, %v2458
        %v2461 = vadd.f32 %v2453, %v2459
        %2462 = vst.msk [vmem:[%s229] sm:$0xff] %vm775, %v2461
        %s2463 = sand.u32 %s151, 1
        %s2464 = scalar_lea.sflag [#allocation4], %s2463
        %s2465 = sand.u32 %s151, 1
        %s2466 = smul.addr %s2465, 8
        %s2467 = scalar_lea.vmem [#allocation3], %s2466
        // Predicated region
        $region52: #{tpu_custom_call.1} parent=39 // pred_check
          %p2468 = pneg %p161
        $region53: #{tpu_custom_call.1} parent=39 // pred_check_branch
          %2470 = sbr.rel (%p2468) target = $region55
        $region54: #{tpu_custom_call.1} parent=39 // pred_region
          %s2472 = ssub.s32 128, 128
          %2473 = vsyncadd %s2464, %s2472
          %s2474 = sadd.s32 %s24, %s23
          %s2475 = smul.addr %s2474, 128
          %s2476 = scalar_lea.hbm %s5, %s2475
          %s2478 = sshll.u32 %s2467, 4
          %s2479 = int_to_ptr.vmem [resolvable:$true] %s2478
          %2481 = dma.vmem_to_hbm [thread:$0]  %s2479, 128, %s2476, %s2464
        $region55: #{tpu_custom_call.1} parent=39 // pred_fallthru
          _
      $region40: #{tpu_custom_call.1} parent=5 // pred_fallthru
        _
      %p2482 = scmp.le.s32.totalorder 2, %s14
      // Predicated region
      $region56: #{tpu_custom_call.1} parent=5 // pred_check
        %p2483 = pneg %p2482
      $region57: #{tpu_custom_call.1} parent=5 // pred_check_branch
        %2485 = sbr.rel (%p2483) target = $region59
      $region58: #{tpu_custom_call.1} parent=5 // pred_region
        %s2486 = ssub.s32 %s14, 2
        // Predicated region
        $region60: #{tpu_custom_call.1} parent=58 // pred_check
          %p2487 = pneg %p167
        $region61: #{tpu_custom_call.1} parent=58 // pred_check_branch
          %2489 = sbr.rel (%p2487) target = $region63
        $region62: #{tpu_custom_call.1} parent=58 // pred_region
          %s2490 = sand.u32 %s152, 1
          %s2491 = scalar_lea.sflag [#allocation4], %s2490
          %s2492 = sand.u32 %s152, 1
          %s2493 = smul.addr %s2492, 8
          %s2494 = scalar_lea.vmem [#allocation3], %s2493
          %2495 = dma.done %s2491, 128
        $region63: #{tpu_custom_call.1} parent=58 // pred_fallthru
          _
      $region59: #{tpu_custom_call.1} parent=5 // pred_fallthru
        _
    $region6: #{tpu_custom_call.1} parent=1 // loop_footer
      %s18 = sadd.s32 1, %s14
    $region7: #{tpu_custom_call.1} parent=1 // loop_footer_branch
      %13 = sbr.rel target = $region3
    $region8: #{tpu_custom_call.1} parent=1 // loop_exit
      _
    %2496 = vsyncpa [#allocation4], 1
    %s2497 = scalar_lea.sflag [#allocation4], 1
    %2498 = vsyncpa %s2497, 1

</llo_original>
